<compile_context>
chip_gen: v6e
topology: v6e:2x2x1
jax: 0.10.0
libtpu: 0.0.40
codegen_flags: <defaults>
</compile_context>

<pallas_src>
import jax
import jax.numpy as jnp
from jax import lax
from jax.experimental import pallas as pl
from jax.experimental.pallas import tpu as pltpu

# ---------------- graph / model configuration ----------------
NODE_FEATS = {"bus": 6, "gen": 4}          # num_node_features per node type
N_NODES = {"bus": 12, "gen": 5}
MSG_TYPES = {                              # message type -> num_edge_features
    ("bus", "connects", "bus"): 3,
    ("gen", "feeds", "bus"): 2,
    ("bus", "powers", "gen"): 2,
}
N_EDGES = {
    ("bus", "connects", "bus"): 20,
    ("gen", "feeds", "bus"): 10,
    ("bus", "powers", "gen"): 10,
}
MSG_ORDER = (("bus", "connects", "bus"),
             ("gen", "feeds", "bus"),
             ("bus", "powers", "gen"))
NODE_ORDER = ("bus", "gen")
NUM_LAYERS = 2
HIDDEN = 32
TWO_H = 2 * HIDDEN                         # combined-layout width: bus cols 0:32, gen 32:64

# combined node numbering: bus nodes -> rows [0,12), gen nodes -> rows [16,21)
N_BUS = N_NODES["bus"]
N_GEN = N_NODES["gen"]
GEN_OFF = 16                               # 8-aligned start of the gen row block
N_PAD = 24
NODE_OFF = {"bus": 0, "gen": GEN_OFF}

E_ALL = sum(N_EDGES.values())              # 40 real edges
E_PAD = 128                                # edges live on the lane dim (one full vreg row)
EF_W = 8                                   # edge-feature slab width (7 used, padded to 8)

# packed parameter-slab layout (every block 8-row aligned, full lane extent)
W_ROWS = TWO_H                             # 64 rows per per-layer conv weight block
POST_BASE = NUM_LAYERS * W_ROWS            # 128: post_mp block-diagonal weights
WE_BASE = POST_BASE + TWO_H                # 192: per-layer edge-feature weight blocks
MISC_BASE = WE_BASE + NUM_LAYERS * EF_W    # 208: misc rows
THETA_ROWS = MISC_BASE + 16                # 224
# misc rows (offset within [MISC_BASE, THETA_ROWS)):
#   0,1  per-layer conv bias row        2..5  per-layer BN gamma/beta
#   6,7  per-layer PReLU slope row      8,9   post_mp bias (bus / gen)

# cross-message-type 'mean': 1 / (#message types targeting this node type)
_N_MSGS_TO = {}
for _m in MSG_ORDER:
    _N_MSGS_TO[_m[2]] = _N_MSGS_TO.get(_m[2], 0) + 1
INV_MSGS = {nt: 1.0 / _N_MSGS_TO[nt] for nt in NODE_ORDER}


# ---------------- the single fused Pallas kernel ----------------

def _fused_forward_kernel(xb_ref, xg_ref, eidx_ref, ef_ref, theta_ref,
                          out_ref, x_scr):
    f32 = jnp.float32

    # ---- assemble the combined node-feature slab X0 [N_PAD, 2H] in VMEM ----
    # bus rows [0,12): features in cols [0,6); gen rows [16,21): cols [32,36).
    x_scr[...] = jnp.zeros((N_PAD, TWO_H), f32)
    x_scr[0:N_BUS, 0:NODE_FEATS["bus"]] = xb_ref[...]
    x_scr[GEN_OFF:GEN_OFF + N_GEN, HIDDEN:HIDDEN + NODE_FEATS["gen"]] = xg_ref[...]
    x = x_scr[...]

    # ---- graph one-hots built in-kernel (iota == index); edges on the lane dim ----
    src_row = eidx_ref[0:1, :]                                   # [1, E_PAD] int32
    dst_row = eidx_ref[1:2, :]                                   # padding edges = -1
    node_iota = lax.broadcasted_iota(jnp.int32, (N_PAD, E_PAD), 0)
    gsrc_t = jnp.where(node_iota == src_row, 1.0, 0.0)           # [N_PAD, E_PAD]
    gdst_t = jnp.where(node_iota == dst_row, 1.0, 0.0)

    # layer-invariant masks / constants
    r1 = lax.broadcasted_iota(jnp.int32, (N_PAD, 1), 0)
    is_bus_r = jnp.where(r1 < N_BUS, 1.0, 0.0)
    is_gen_r = jnp.where((r1 >= GEN_OFF) & (r1 < GEN_OFF + N_GEN), 1.0, 0.0)
    rii = lax.broadcasted_iota(jnp.int32, (N_PAD, TWO_H), 0)
    cii = lax.broadcasted_iota(jnp.int32, (N_PAD, TWO_H), 1)
    bus_rows = jnp.where(rii < N_BUS, 1.0, 0.0)
    gen_rows = jnp.where((rii >= GEN_OFF) & (rii < GEN_OFF + N_GEN), 1.0, 0.0)
    mask = jnp.where(cii < HIDDEN, bus_rows, gen_rows)           # valid (row, col) pairs
    c1 = lax.broadcasted_iota(jnp.int32, (1, TWO_H), 1)
    inv_cnt = jnp.where(c1 < HIDDEN, 1.0 / N_BUS, 1.0 / N_GEN)   # BN batch size per column

    # dense adjacency over combined node ids:  A[d, s] = #edges s -> d
    # (equivalent to the per-destination scatter-sum; the destination type
    #  selects which message type contributes, so no cross-type mixing).
    a_full = lax.dot_general(gdst_t, gsrc_t, (((1,), (1,)), ((), ())),
                             preferred_element_type=f32)          # [N_PAD, N_PAD]
    # fold the wrapper's cross-message-type 'mean' into the adjacency rows
    a_full = a_full * (INV_MSGS["bus"] * is_bus_r + INV_MSGS["gen"] * is_gen_r)

    # scatter-summed edge features per destination node (layer-invariant)
    ef_agg = jnp.dot(gdst_t, ef_ref[...], preferred_element_type=f32)  # [N_PAD, EF_W]

    misc = theta_ref[MISC_BASE:THETA_ROWS, :]                    # [16, 2H] (aligned load)

    # ---- 2 x { per-message-type HeteroGNNConv + mean + BatchNorm(eps=1) + PReLU } ----
    for l in range(NUM_LAYERS):                                  # unrolled (2 layers)
        w = theta_ref[W_ROWS * l:W_ROWS * (l + 1), :]            # [2H, 2H]   (aligned)
        we = theta_ref[WE_BASE + EF_W * l:WE_BASE + EF_W * (l + 1), :]  # [EF_W, 2H]
        z = jnp.dot(x, w, preferred_element_type=f32)            # per-src x @ Wx^T (all types)
        h = jnp.dot(a_full, z, preferred_element_type=f32)       # scatter-sum + type-mean
        h = h + jnp.dot(ef_agg, we, preferred_element_type=f32)  # edge-feature part
        h = (h + misc[l:l + 1, :]) * mask                        # lin_update bias (once per dst)
        # nn.BatchNorm1d(HIDDEN, eps=1): training-mode batch stats, biased variance,
        # computed per node type (column block / row mask).
        # TODO(synk): eval-mode running statistics are not modeled here.
        mean = jnp.sum(h, axis=0, keepdims=True) * inv_cnt
        cent = (h - mean) * mask
        var = jnp.sum(cent * cent, axis=0, keepdims=True) * inv_cnt
        y = (misc[2 + 2 * l:3 + 2 * l, :] * (cent * lax.rsqrt(var + 1.0))
             + misc[3 + 2 * l:4 + 2 * l, :])
        # nn.PReLU(): one scalar slope per (layer, node type), broadcast per column block
        y = jnp.where(y > 0, y, misc[6 + l:7 + l, :] * y)
        x = y * mask

    # ---- post message-passing Linear per node type (block-diagonal weights) ----
    p = jnp.dot(x, theta_ref[POST_BASE:POST_BASE + TWO_H, :],
                preferred_element_type=f32)                      # [N_PAD, 2H], emb in cols 0:32
    p = p + is_bus_r * misc[8:9, :] + is_gen_r * misc[9:10, :]

    # ---- fused inner-product edge head for all edge types: sigmoid(<p[src], p[dst]>) ----
    q = lax.dot_general(p, p, (((1,), (1,)), ((), ())),
                        preferred_element_type=f32)              # node-pair Gram [N_PAD, N_PAD]
    r = jnp.dot(q, gdst_t, preferred_element_type=f32)           # [N_PAD, E_PAD]
    s = jnp.sum(gsrc_t * r, axis=0, keepdims=True)               # [1, E_PAD] edge scores
    # lane-dense output: 40 real scores along lanes of one (8,128) tile
    out_ref[...] = jnp.broadcast_to(jax.nn.sigmoid(s), (8, E_PAD))


# ---------------- graph packing (done ONCE per graph, outside the hot path) -------------

def prepare_graph(edge_index, edge_feature):
    """Pack edge_index / edge_feature dicts into two small device slabs.

    eidx [8, E_PAD] int32: row 0 = src, row 1 = dst (combined node numbering,
    -1 padding).  ef [E_PAD, EF_W] f32: per-edge features in type-specific
    column blocks (bb -> 0:3, gb -> 3:5, bg -> 5:7)."""
    eidx = jnp.full((8, E_PAD), -1, jnp.int32)
    ef = jnp.zeros((E_PAD, EF_W), jnp.float32)
    row_off, col_off = 0, 0
    src_all, dst_all = [], []
    for m in MSG_ORDER:
        src_t, _, dst_t = m
        ei = edge_index[m]
        ne = N_EDGES[m]
        e_dim = MSG_TYPES[m]
        src_all.append(ei[0].astype(jnp.int32) + NODE_OFF[src_t])
        dst_all.append(ei[1].astype(jnp.int32) + NODE_OFF[dst_t])
        ef = ef.at[row_off:row_off + ne, col_off:col_off + e_dim].set(
            edge_feature[m].astype(jnp.float32))
        row_off += ne
        col_off += e_dim
    eidx = eidx.at[0, 0:row_off].set(jnp.concatenate(src_all))
    eidx = eidx.at[1, 0:row_off].set(jnp.concatenate(dst_all))
    return {"eidx": eidx, "ef": ef}


# ---------------- parameter construction & packing (done once) ----------------

def init_params(key):
    """PyTorch-style init of the module's parameters (structured, per sub-module)."""
    k = key

    def nk():
        nonlocal k
        k, sub = jax.random.split(k)
        return sub

    def uniform(shape, bound):
        return jax.random.uniform(nk(), shape, jnp.float32, -bound, bound)

    params = {"convs": [], "bn": [], "prelu": [], "post": {}}
    for l in range(NUM_LAYERS):
        convs_l = {}
        for m in MSG_ORDER:
            in_node = NODE_FEATS[m[0]] if l == 0 else HIDDEN
            in_ch = in_node + MSG_TYPES[m]
            bound = float(in_ch) ** -0.5
            convs_l[m] = {"W": uniform((HIDDEN, in_ch), bound),
                          "b": uniform((HIDDEN,), bound)}
        params["convs"].append(convs_l)
        params["bn"].append({nt: {"gamma": jnp.ones((HIDDEN,), jnp.float32),
                                  "beta": jnp.zeros((HIDDEN,), jnp.float32)}
                             for nt in NODE_ORDER})
        params["prelu"].append({nt: jnp.float32(0.25) for nt in NODE_ORDER})
    for nt in NODE_ORDER:
        bound = float(HIDDEN) ** -0.5
        params["post"][nt] = {"W": uniform((HIDDEN, HIDDEN), bound),
                              "b": uniform((HIDDEN,), bound)}
    return params


def pack_params(params):
    """Pack all parameters into one 8-row-aligned [THETA_ROWS, 2H] slab."""
    H = HIDDEN
    theta = jnp.zeros((THETA_ROWS, TWO_H), jnp.float32)
    for l in range(NUM_LAYERS):
        ef_col = 0
        for m in MSG_ORDER:
            src_t, _, dst_t = m
            n_in = NODE_FEATS[src_t] if l == 0 else H
            e_dim = MSG_TYPES[m]
            W = params["convs"][l][m]["W"]        # [H, n_in + e_dim]
            b = params["convs"][l][m]["b"]        # [H]
            scale = INV_MSGS[dst_t]               # cross-message-type 'mean'
            col0 = 0 if dst_t == "bus" else H     # destination column block
            row0 = W_ROWS * l + (0 if src_t == "bus" else H)   # source row block
            theta = theta.at[row0:row0 + n_in, col0:col0 + H].set(W[:, :n_in].T)
            wrow = WE_BASE + EF_W * l + ef_col
            theta = theta.at[wrow:wrow + e_dim, col0:col0 + H].set(scale * W[:, n_in:].T)
            theta = theta.at[MISC_BASE + l, col0:col0 + H].add(scale * b)
            ef_col += e_dim
        for t_i, nt in enumerate(NODE_ORDER):
            col0 = t_i * H
            theta = theta.at[MISC_BASE + 2 + 2 * l, col0:col0 + H].set(
                params["bn"][l][nt]["gamma"])
            theta = theta.at[MISC_BASE + 3 + 2 * l, col0:col0 + H].set(
                params["bn"][l][nt]["beta"])
            theta = theta.at[MISC_BASE + 6 + l, col0:col0 + H].set(
                jnp.full((H,), params["prelu"][l][nt], jnp.float32))
    for t_i, nt in enumerate(NODE_ORDER):
        theta = theta.at[POST_BASE + t_i * H:POST_BASE + (t_i + 1) * H, 0:H].set(
            params["post"][nt]["W"].T)
        theta = theta.at[MISC_BASE + 8 + t_i, 0:H].set(params["post"][nt]["b"])
    return theta


# ---------------- forward pass: ONE pallas_call, ~5 HLOs total ----------------

_VMEM = pl.BlockSpec(memory_space=pltpu.MemorySpace.VMEM)


def hetero_gnn_forward(theta, node_feature, graph):
    out = pl.pallas_call(
        _fused_forward_kernel,
        out_shape=jax.ShapeDtypeStruct((8, E_PAD), jnp.float32),
        in_specs=[_VMEM] * 5,
        out_specs=_VMEM,
        scratch_shapes=[pltpu.VMEM((N_PAD, TWO_H), jnp.float32)],
    )(node_feature["bus"], node_feature["gen"], graph["eidx"], graph["ef"], theta)
    scores = out[0]                         # lane-dense row of 40 sigmoid scores
    res, off = {}, 0
    for m in MSG_ORDER:
        res[m] = scores[off:off + N_EDGES[m]]
        off += N_EDGES[m]
    return res


if __name__ == "__main__":
    key = jax.random.PRNGKey(0)
    kp, kd = jax.random.split(key)
    params = init_params(kp)
    theta = pack_params(params)             # packed once, resident on device

    data_keys = iter(jax.random.split(kd, 16))
    node_feature = {
        nt: jax.random.normal(next(data_keys), (N_NODES[nt], f), jnp.float32)
        for nt, f in NODE_FEATS.items()
    }
    edge_index, edge_feature = {}, {}
    for m, e_dim in MSG_TYPES.items():
        src, _, dst = m
        ne = N_EDGES[m]
        row = jax.random.randint(next(data_keys), (ne,), 0, N_NODES[src], jnp.int32)
        col = jax.random.randint(next(data_keys), (ne,), 0, N_NODES[dst], jnp.int32)
        edge_index[m] = jnp.stack([row, col], axis=0)
        edge_feature[m] = jax.random.normal(next(data_keys), (ne, e_dim), jnp.float32)

    graph = prepare_graph(edge_index, edge_feature)   # packed once per graph

    fwd = jax.jit(hetero_gnn_forward)
    out = fwd(theta, node_feature, graph)
    jax.block_until_ready(out)
    print("KERNEL_OK")
</pallas_src>

<mosaic_0001>
module attributes {stable_mosaic.version = 11 : i64} {
  func.func @_fused_forward_kernel(%arg0: memref<12x6xf32, #tpu.memory_space<vmem>>, %arg1: memref<5x4xf32, #tpu.memory_space<vmem>>, %arg2: memref<8x128xi32, #tpu.memory_space<vmem>>, %arg3: memref<128x8xf32, #tpu.memory_space<vmem>>, %arg4: memref<224x64xf32, #tpu.memory_space<vmem>>, %arg5: memref<8x128xf32, #tpu.memory_space<vmem>>, %arg6: memref<24x64xf32, #tpu.memory_space<vmem>>) attributes {dimension_semantics = [], scalar_prefetch = 0 : i64, scratch_operands = 1 : i64, tpu.core_type = #tpu.core_type<tc>} {
    %cst = arith.constant 0.000000e+00 : f32
    %0 = vector.broadcast %cst : f32 to vector<24x64xf32>
    %c0 = arith.constant 0 : index
    %c0_0 = arith.constant 0 : index
    %1 = vector.load %arg6[%c0, %c0_0] : memref<24x64xf32, #tpu.memory_space<vmem>>, vector<24x64xf32>
    tpu.vector_store %arg6[%c0, %c0_0], %0 {strides = array<i32>} : memref<24x64xf32, #tpu.memory_space<vmem>>, vector<24x64xf32>,
    %c0_1 = arith.constant 0 : index
    %c0_2 = arith.constant 0 : index
    %2 = vector.load %arg0[%c0_1, %c0_2] : memref<12x6xf32, #tpu.memory_space<vmem>>, vector<12x6xf32>
    %c0_3 = arith.constant 0 : index
    %c0_4 = arith.constant 0 : index
    %3 = vector.load %arg6[%c0_3, %c0_4] : memref<24x64xf32, #tpu.memory_space<vmem>>, vector<12x6xf32>
    tpu.vector_store %arg6[%c0_3, %c0_4], %2 {strides = array<i32>} : memref<24x64xf32, #tpu.memory_space<vmem>>, vector<12x6xf32>,
    %c0_5 = arith.constant 0 : index
    %c0_6 = arith.constant 0 : index
    %4 = vector.load %arg1[%c0_5, %c0_6] : memref<5x4xf32, #tpu.memory_space<vmem>>, vector<5x4xf32>
    %c16 = arith.constant 16 : index
    %c32 = arith.constant 32 : index
    %5 = vector.load %arg6[%c16, %c32] : memref<24x64xf32, #tpu.memory_space<vmem>>, vector<5x4xf32>
    tpu.vector_store %arg6[%c16, %c32], %4 {strides = array<i32>} : memref<24x64xf32, #tpu.memory_space<vmem>>, vector<5x4xf32>,
    %c0_7 = arith.constant 0 : index
    %c0_8 = arith.constant 0 : index
    %6 = vector.load %arg6[%c0_7, %c0_8] : memref<24x64xf32, #tpu.memory_space<vmem>>, vector<24x64xf32>
    %c0_9 = arith.constant 0 : index
    %c0_10 = arith.constant 0 : index
    %7 = vector.load %arg2[%c0_9, %c0_10] : memref<8x128xi32, #tpu.memory_space<vmem>>, vector<1x128xi32>
    %c1 = arith.constant 1 : index
    %c0_11 = arith.constant 0 : index
    %8 = vector.load %arg2[%c1, %c0_11] : memref<8x128xi32, #tpu.memory_space<vmem>>, vector<1x128xi32>
    %9 = tpu.iota {dimensions = array<i32: 0>} : vector<24x128xi32>
    %10 = vector.broadcast %7 : vector<1x128xi32> to vector<24x128xi32>
    %11 = arith.cmpi eq, %9, %10 : vector<24x128xi32>
    %cst_12 = arith.constant 1.000000e+00 : f32
    %cst_13 = arith.constant 0.000000e+00 : f32
    %12 = vector.broadcast %cst_12 : f32 to vector<24x128xf32>
    %13 = vector.broadcast %cst_13 : f32 to vector<24x128xf32>
    %14 = arith.select %11, %12, %13 : vector<24x128xi1>, vector<24x128xf32>
    %15 = vector.broadcast %8 : vector<1x128xi32> to vector<24x128xi32>
    %16 = arith.cmpi eq, %9, %15 : vector<24x128xi32>
    %cst_14 = arith.constant 1.000000e+00 : f32
    %cst_15 = arith.constant 0.000000e+00 : f32
    %17 = vector.broadcast %cst_14 : f32 to vector<24x128xf32>
    %18 = vector.broadcast %cst_15 : f32 to vector<24x128xf32>
    %19 = arith.select %16, %17, %18 : vector<24x128xi1>, vector<24x128xf32>
    %20 = tpu.iota {dimensions = array<i32: 0>} : vector<24x1xi32>
    %c12_i32 = arith.constant 12 : i32
    %21 = vector.broadcast %c12_i32 : i32 to vector<24x1xi32>
    %22 = arith.cmpi slt, %20, %21 : vector<24x1xi32>
    %cst_16 = arith.constant 1.000000e+00 : f32
    %cst_17 = arith.constant 0.000000e+00 : f32
    %23 = vector.broadcast %cst_16 : f32 to vector<24x1xf32>
    %24 = vector.broadcast %cst_17 : f32 to vector<24x1xf32>
    %25 = arith.select %22, %23, %24 : vector<24x1xi1>, vector<24x1xf32>
    %c16_i32 = arith.constant 16 : i32
    %26 = vector.broadcast %c16_i32 : i32 to vector<24x1xi32>
    %27 = arith.cmpi sge, %20, %26 : vector<24x1xi32>
    %c21_i32 = arith.constant 21 : i32
    %28 = vector.broadcast %c21_i32 : i32 to vector<24x1xi32>
    %29 = arith.cmpi slt, %20, %28 : vector<24x1xi32>
    %30 = arith.andi %27, %29 : vector<24x1xi1>
    %cst_18 = arith.constant 1.000000e+00 : f32
    %cst_19 = arith.constant 0.000000e+00 : f32
    %31 = vector.broadcast %cst_18 : f32 to vector<24x1xf32>
    %32 = vector.broadcast %cst_19 : f32 to vector<24x1xf32>
    %33 = arith.select %30, %31, %32 : vector<24x1xi1>, vector<24x1xf32>
    %34 = tpu.iota {dimensions = array<i32: 0>} : vector<24x64xi32>
    %35 = tpu.iota {dimensions = array<i32: 1>} : vector<24x64xi32>
    %c12_i32_20 = arith.constant 12 : i32
    %36 = vector.broadcast %c12_i32_20 : i32 to vector<24x64xi32>
    %37 = arith.cmpi slt, %34, %36 : vector<24x64xi32>
    %cst_21 = arith.constant 1.000000e+00 : f32
    %cst_22 = arith.constant 0.000000e+00 : f32
    %38 = vector.broadcast %cst_21 : f32 to vector<24x64xf32>
    %39 = vector.broadcast %cst_22 : f32 to vector<24x64xf32>
    %40 = arith.select %37, %38, %39 : vector<24x64xi1>, vector<24x64xf32>
    %c16_i32_23 = arith.constant 16 : i32
    %41 = vector.broadcast %c16_i32_23 : i32 to vector<24x64xi32>
    %42 = arith.cmpi sge, %34, %41 : vector<24x64xi32>
    %c21_i32_24 = arith.constant 21 : i32
    %43 = vector.broadcast %c21_i32_24 : i32 to vector<24x64xi32>
    %44 = arith.cmpi slt, %34, %43 : vector<24x64xi32>
    %45 = arith.andi %42, %44 : vector<24x64xi1>
    %cst_25 = arith.constant 1.000000e+00 : f32
    %cst_26 = arith.constant 0.000000e+00 : f32
    %46 = vector.broadcast %cst_25 : f32 to vector<24x64xf32>
    %47 = vector.broadcast %cst_26 : f32 to vector<24x64xf32>
    %48 = arith.select %45, %46, %47 : vector<24x64xi1>, vector<24x64xf32>
    %c32_i32 = arith.constant 32 : i32
    %49 = vector.broadcast %c32_i32 : i32 to vector<24x64xi32>
    %50 = arith.cmpi slt, %35, %49 : vector<24x64xi32>
    %51 = arith.select %50, %40, %48 : vector<24x64xi1>, vector<24x64xf32>
    %52 = tpu.iota {dimensions = array<i32: 1>} : vector<1x64xi32>
    %c32_i32_27 = arith.constant 32 : i32
    %53 = vector.broadcast %c32_i32_27 : i32 to vector<1x64xi32>
    %54 = arith.cmpi slt, %52, %53 : vector<1x64xi32>
    %cst_28 = arith.constant 0.0833333358 : f32
    %cst_29 = arith.constant 2.000000e-01 : f32
    %55 = vector.broadcast %cst_28 : f32 to vector<1x64xf32>
    %56 = vector.broadcast %cst_29 : f32 to vector<1x64xf32>
    %57 = arith.select %54, %55, %56 : vector<1x64xi1>, vector<1x64xf32>
    %cst_30 = arith.constant dense<0.000000e+00> : vector<24x24xf32>
    %58 = tpu.matmul %19, %14, %cst_30 {dimension_numbers = #tpu.dot_dimension_numbers<[1], [1], [0], [0], [0, 0, 1, 0], [], []>} : vector<24x128xf32>, vector<24x128xf32>, vector<24x24xf32> -> vector<24x24xf32>
    %cst_31 = arith.constant 5.000000e-01 : f32
    %59 = vector.broadcast %cst_31 : f32 to vector<24x1xf32>
    %60 = arith.mulf %59, %25 : vector<24x1xf32>
    %cst_32 = arith.constant 1.000000e+00 : f32
    %61 = vector.broadcast %cst_32 : f32 to vector<24x1xf32>
    %62 = arith.mulf %61, %33 : vector<24x1xf32>
    %63 = arith.addf %60, %62 : vector<24x1xf32>
    %64 = vector.broadcast %63 : vector<24x1xf32> to vector<24x24xf32>
    %65 = arith.mulf %58, %64 : vector<24x24xf32>
    %c0_33 = arith.constant 0 : index
    %c0_34 = arith.constant 0 : index
    %66 = vector.load %arg3[%c0_33, %c0_34] : memref<128x8xf32, #tpu.memory_space<vmem>>, vector<128x8xf32>
    %cst_35 = arith.constant dense<0.000000e+00> : vector<24x8xf32>
    %67 = tpu.matmul %19, %66, %cst_35 {dimension_numbers = #tpu.dot_dimension_numbers<[1], [0], [0], [1], [0, 0, 1, 1], [], []>} : vector<24x128xf32>, vector<128x8xf32>, vector<24x8xf32> -> vector<24x8xf32>
    %c208 = arith.constant 208 : index
    %c0_36 = arith.constant 0 : index
    %68 = vector.load %arg4[%c208, %c0_36] : memref<224x64xf32, #tpu.memory_space<vmem>>, vector<16x64xf32>
    %c0_37 = arith.constant 0 : index
    %c0_38 = arith.constant 0 : index
    %69 = vector.load %arg4[%c0_37, %c0_38] : memref<224x64xf32, #tpu.memory_space<vmem>>, vector<64x64xf32>
    %c192 = arith.constant 192 : index
    %c0_39 = arith.constant 0 : index
    %70 = vector.load %arg4[%c192, %c0_39] : memref<224x64xf32, #tpu.memory_space<vmem>>, vector<8x64xf32>
    %cst_40 = arith.constant dense<0.000000e+00> : vector<24x64xf32>
    %71 = tpu.matmul %6, %69, %cst_40 {dimension_numbers = #tpu.dot_dimension_numbers<[1], [0], [0], [1], [0, 0, 1, 1], [], []>} : vector<24x64xf32>, vector<64x64xf32>, vector<24x64xf32> -> vector<24x64xf32>
    %cst_41 = arith.constant dense<0.000000e+00> : vector<24x64xf32>
    %72 = tpu.matmul %65, %71, %cst_41 {dimension_numbers = #tpu.dot_dimension_numbers<[1], [0], [0], [1], [0, 0, 1, 1], [], []>} : vector<24x24xf32>, vector<24x64xf32>, vector<24x64xf32> -> vector<24x64xf32>
    %cst_42 = arith.constant dense<0.000000e+00> : vector<24x64xf32>
    %73 = tpu.matmul %67, %70, %cst_42 {dimension_numbers = #tpu.dot_dimension_numbers<[1], [0], [0], [1], [0, 0, 1, 1], [], []>} : vector<24x8xf32>, vector<8x64xf32>, vector<24x64xf32> -> vector<24x64xf32>
    %74 = arith.addf %72, %73 : vector<24x64xf32>
    %75 = vector.extract_strided_slice %68 {offsets = [0, 0], sizes = [1, 64], strides = [1, 1]} : vector<16x64xf32> to vector<1x64xf32>
    %76 = vector.broadcast %75 : vector<1x64xf32> to vector<24x64xf32>
    %77 = arith.addf %74, %76 : vector<24x64xf32>
    %78 = arith.mulf %77, %51 : vector<24x64xf32>
    %cst_43 = arith.constant dense<0.000000e+00> : vector<64xf32>
    %79 = vector.multi_reduction <add>, %78, %cst_43 [0] : vector<24x64xf32> to vector<64xf32>
    %80 = vector.shape_cast %79 : vector<64xf32> to vector<1x64xf32>
    %81 = arith.mulf %80, %57 : vector<1x64xf32>
    %82 = vector.broadcast %81 : vector<1x64xf32> to vector<24x64xf32>
    %83 = arith.subf %78, %82 : vector<24x64xf32>
    %84 = arith.mulf %83, %51 : vector<24x64xf32>
    %85 = arith.mulf %84, %84 : vector<24x64xf32>
    %cst_44 = arith.constant dense<0.000000e+00> : vector<64xf32>
    %86 = vector.multi_reduction <add>, %85, %cst_44 [0] : vector<24x64xf32> to vector<64xf32>
    %87 = vector.shape_cast %86 : vector<64xf32> to vector<1x64xf32>
    %88 = arith.mulf %87, %57 : vector<1x64xf32>
    %89 = vector.extract_strided_slice %68 {offsets = [2, 0], sizes = [1, 64], strides = [1, 1]} : vector<16x64xf32> to vector<1x64xf32>
    %cst_45 = arith.constant 1.000000e+00 : f32
    %90 = vector.broadcast %cst_45 : f32 to vector<1x64xf32>
    %91 = arith.addf %88, %90 : vector<1x64xf32>
    %92 = math.rsqrt %91 : vector<1x64xf32>
    %93 = vector.broadcast %92 : vector<1x64xf32> to vector<24x64xf32>
    %94 = arith.mulf %84, %93 : vector<24x64xf32>
    %95 = vector.broadcast %89 : vector<1x64xf32> to vector<24x64xf32>
    %96 = arith.mulf %95, %94 : vector<24x64xf32>
    %97 = vector.extract_strided_slice %68 {offsets = [3, 0], sizes = [1, 64], strides = [1, 1]} : vector<16x64xf32> to vector<1x64xf32>
    %98 = vector.broadcast %97 : vector<1x64xf32> to vector<24x64xf32>
    %99 = arith.addf %96, %98 : vector<24x64xf32>
    %cst_46 = arith.constant 0.000000e+00 : f32
    %100 = vector.broadcast %cst_46 : f32 to vector<24x64xf32>
    %101 = arith.cmpf ogt, %99, %100 : vector<24x64xf32>
    %102 = vector.extract_strided_slice %68 {offsets = [6, 0], sizes = [1, 64], strides = [1, 1]} : vector<16x64xf32> to vector<1x64xf32>
    %103 = vector.broadcast %102 : vector<1x64xf32> to vector<24x64xf32>
    %104 = arith.mulf %103, %99 : vector<24x64xf32>
    %105 = arith.select %101, %99, %104 : vector<24x64xi1>, vector<24x64xf32>
    %106 = arith.mulf %105, %51 : vector<24x64xf32>
    %c64 = arith.constant 64 : index
    %c0_47 = arith.constant 0 : index
    %107 = vector.load %arg4[%c64, %c0_47] : memref<224x64xf32, #tpu.memory_space<vmem>>, vector<64x64xf32>
    %c200 = arith.constant 200 : index
    %c0_48 = arith.constant 0 : index
    %108 = vector.load %arg4[%c200, %c0_48] : memref<224x64xf32, #tpu.memory_space<vmem>>, vector<8x64xf32>
    %cst_49 = arith.constant dense<0.000000e+00> : vector<24x64xf32>
    %109 = tpu.matmul %106, %107, %cst_49 {dimension_numbers = #tpu.dot_dimension_numbers<[1], [0], [0], [1], [0, 0, 1, 1], [], []>} : vector<24x64xf32>, vector<64x64xf32>, vector<24x64xf32> -> vector<24x64xf32>
    %cst_50 = arith.constant dense<0.000000e+00> : vector<24x64xf32>
    %110 = tpu.matmul %65, %109, %cst_50 {dimension_numbers = #tpu.dot_dimension_numbers<[1], [0], [0], [1], [0, 0, 1, 1], [], []>} : vector<24x24xf32>, vector<24x64xf32>, vector<24x64xf32> -> vector<24x64xf32>
    %cst_51 = arith.constant dense<0.000000e+00> : vector<24x64xf32>
    %111 = tpu.matmul %67, %108, %cst_51 {dimension_numbers = #tpu.dot_dimension_numbers<[1], [0], [0], [1], [0, 0, 1, 1], [], []>} : vector<24x8xf32>, vector<8x64xf32>, vector<24x64xf32> -> vector<24x64xf32>
    %112 = arith.addf %110, %111 : vector<24x64xf32>
    %113 = vector.extract_strided_slice %68 {offsets = [1, 0], sizes = [1, 64], strides = [1, 1]} : vector<16x64xf32> to vector<1x64xf32>
    %114 = vector.broadcast %113 : vector<1x64xf32> to vector<24x64xf32>
    %115 = arith.addf %112, %114 : vector<24x64xf32>
    %116 = arith.mulf %115, %51 : vector<24x64xf32>
    %cst_52 = arith.constant dense<0.000000e+00> : vector<64xf32>
    %117 = vector.multi_reduction <add>, %116, %cst_52 [0] : vector<24x64xf32> to vector<64xf32>
    %118 = vector.shape_cast %117 : vector<64xf32> to vector<1x64xf32>
    %119 = arith.mulf %118, %57 : vector<1x64xf32>
    %120 = vector.broadcast %119 : vector<1x64xf32> to vector<24x64xf32>
    %121 = arith.subf %116, %120 : vector<24x64xf32>
    %122 = arith.mulf %121, %51 : vector<24x64xf32>
    %123 = arith.mulf %122, %122 : vector<24x64xf32>
    %cst_53 = arith.constant dense<0.000000e+00> : vector<64xf32>
    %124 = vector.multi_reduction <add>, %123, %cst_53 [0] : vector<24x64xf32> to vector<64xf32>
    %125 = vector.shape_cast %124 : vector<64xf32> to vector<1x64xf32>
    %126 = arith.mulf %125, %57 : vector<1x64xf32>
    %127 = vector.extract_strided_slice %68 {offsets = [4, 0], sizes = [1, 64], strides = [1, 1]} : vector<16x64xf32> to vector<1x64xf32>
    %cst_54 = arith.constant 1.000000e+00 : f32
    %128 = vector.broadcast %cst_54 : f32 to vector<1x64xf32>
    %129 = arith.addf %126, %128 : vector<1x64xf32>
    %130 = math.rsqrt %129 : vector<1x64xf32>
    %131 = vector.broadcast %130 : vector<1x64xf32> to vector<24x64xf32>
    %132 = arith.mulf %122, %131 : vector<24x64xf32>
    %133 = vector.broadcast %127 : vector<1x64xf32> to vector<24x64xf32>
    %134 = arith.mulf %133, %132 : vector<24x64xf32>
    %135 = vector.extract_strided_slice %68 {offsets = [5, 0], sizes = [1, 64], strides = [1, 1]} : vector<16x64xf32> to vector<1x64xf32>
    %136 = vector.broadcast %135 : vector<1x64xf32> to vector<24x64xf32>
    %137 = arith.addf %134, %136 : vector<24x64xf32>
    %cst_55 = arith.constant 0.000000e+00 : f32
    %138 = vector.broadcast %cst_55 : f32 to vector<24x64xf32>
    %139 = arith.cmpf ogt, %137, %138 : vector<24x64xf32>
    %140 = vector.extract_strided_slice %68 {offsets = [7, 0], sizes = [1, 64], strides = [1, 1]} : vector<16x64xf32> to vector<1x64xf32>
    %141 = vector.broadcast %140 : vector<1x64xf32> to vector<24x64xf32>
    %142 = arith.mulf %141, %137 : vector<24x64xf32>
    %143 = arith.select %139, %137, %142 : vector<24x64xi1>, vector<24x64xf32>
    %144 = arith.mulf %143, %51 : vector<24x64xf32>
    %c128 = arith.constant 128 : index
    %c0_56 = arith.constant 0 : index
    %145 = vector.load %arg4[%c128, %c0_56] : memref<224x64xf32, #tpu.memory_space<vmem>>, vector<64x64xf32>
    %cst_57 = arith.constant dense<0.000000e+00> : vector<24x64xf32>
    %146 = tpu.matmul %144, %145, %cst_57 {dimension_numbers = #tpu.dot_dimension_numbers<[1], [0], [0], [1], [0, 0, 1, 1], [], []>} : vector<24x64xf32>, vector<64x64xf32>, vector<24x64xf32> -> vector<24x64xf32>
    %147 = vector.extract_strided_slice %68 {offsets = [8, 0], sizes = [1, 64], strides = [1, 1]} : vector<16x64xf32> to vector<1x64xf32>
    %148 = vector.broadcast %25 : vector<24x1xf32> to vector<24x64xf32>
    %149 = vector.broadcast %147 : vector<1x64xf32> to vector<24x64xf32>
    %150 = arith.mulf %148, %149 : vector<24x64xf32>
    %151 = arith.addf %146, %150 : vector<24x64xf32>
    %152 = vector.extract_strided_slice %68 {offsets = [9, 0], sizes = [1, 64], strides = [1, 1]} : vector<16x64xf32> to vector<1x64xf32>
    %153 = vector.broadcast %33 : vector<24x1xf32> to vector<24x64xf32>
    %154 = vector.broadcast %152 : vector<1x64xf32> to vector<24x64xf32>
    %155 = arith.mulf %153, %154 : vector<24x64xf32>
    %156 = arith.addf %151, %155 : vector<24x64xf32>
    %cst_58 = arith.constant dense<0.000000e+00> : vector<24x24xf32>
    %157 = tpu.matmul %156, %156, %cst_58 {dimension_numbers = #tpu.dot_dimension_numbers<[1], [1], [0], [0], [0, 0, 1, 0], [], []>} : vector<24x64xf32>, vector<24x64xf32>, vector<24x24xf32> -> vector<24x24xf32>
    %cst_59 = arith.constant dense<0.000000e+00> : vector<24x128xf32>
    %158 = tpu.matmul %157, %19, %cst_59 {dimension_numbers = #tpu.dot_dimension_numbers<[1], [0], [0], [1], [0, 0, 1, 1], [], []>} : vector<24x24xf32>, vector<24x128xf32>, vector<24x128xf32> -> vector<24x128xf32>
    %159 = arith.mulf %14, %158 : vector<24x128xf32>
    %cst_60 = arith.constant dense<0.000000e+00> : vector<128xf32>
    %160 = vector.multi_reduction <add>, %159, %cst_60 [0] : vector<24x128xf32> to vector<128xf32>
    %161 = vector.shape_cast %160 : vector<128xf32> to vector<1x128xf32>
    %162 = arith.negf %161 : vector<1x128xf32>
    %163 = math.exp %162 : vector<1x128xf32>
    %cst_61 = arith.constant 1.000000e+00 : f32
    %164 = vector.broadcast %cst_61 : f32 to vector<1x128xf32>
    %165 = arith.addf %164, %163 : vector<1x128xf32>
    %166 = arith.divf %164, %165 : vector<1x128xf32>
    %167 = vector.shape_cast %166 : vector<1x128xf32> to vector<1x128xf32>
    %168 = vector.broadcast %167 : vector<1x128xf32> to vector<8x128xf32>
    %c0_62 = arith.constant 0 : index
    %c0_63 = arith.constant 0 : index
    %169 = vector.load %arg5[%c0_62, %c0_63] : memref<8x128xf32, #tpu.memory_space<vmem>>, vector<8x128xf32>
    tpu.vector_store %arg5[%c0_62, %c0_63], %168 {strides = array<i32>} : memref<8x128xf32, #tpu.memory_space<vmem>>, vector<8x128xf32>,
    return
  }
}

</mosaic_0001>

<llo_original>
// kernel: hetero_gnn_forward.1
$region0: #{hetero_gnn_forward.1}
  #allocation0 [shape = 'u32[]', space=smem, size = 0x4, offset = 0x4, fixed_abs, tag = 'smem constant byte address 0x4 - core index']
  #allocation1 [shape = 'u32[144,128]{1,0:T(1,128)}', space=vmem, size = 0x12000, scoped, tag = 'internal scratch']
  #allocation2 [shape = 'f32[24,64]{1,0:T(8,128)}', space=vmem, size = 0x3000, scoped, tag = 'scratch operand']
  %s0 = inlined_call_operand.vmem [shape: f32[12,6], index: 0, kind: input, shape index: {}]
  %s1 = inlined_call_operand.vmem [shape: f32[5,4], index: 1, kind: input, shape index: {}]
  %s2 = inlined_call_operand.vmem [shape: s32[8,128], index: 2, kind: input, shape index: {}]
  %s3 = inlined_call_operand.vmem [shape: f32[128,8], index: 3, kind: input, shape index: {}]
  %s4 = inlined_call_operand.vmem [shape: f32[224,64], index: 4, kind: input, shape index: {}]
  %s5 = inlined_call_operand.vmem [shape: f32[8,128], index: 5, kind: output, shape index: {}]
  %s6 = sld [smem:[#allocation0]]
  $region30: #{hetero_gnn_forward.1} parent=0
    _
  %s8 = ssub.s32 1, %s6
  %s9 = scalar_select 0, %s8, %s6
  // Predicated region
  $region2: #{hetero_gnn_forward.1} parent=0 // pred_check
    _
  $region3: #{hetero_gnn_forward.1} parent=0 // pred_check_branch
    %11 = sbr.rel (0) target = $region5
  $region4: #{hetero_gnn_forward.1} parent=0 // pred_region
    _
  $region5: #{hetero_gnn_forward.1} parent=0 // pred_fallthru
    _
  // Predicated region
  $region6: #{hetero_gnn_forward.1} parent=0 // pred_check
    _
  $region7: #{hetero_gnn_forward.1} parent=0 // pred_check_branch
    %13 = sbr.rel (0) target = $region9
  $region8: #{hetero_gnn_forward.1} parent=0 // pred_region
    _
  $region9: #{hetero_gnn_forward.1} parent=0 // pred_fallthru
    _
  // Predicated region
  $region10: #{hetero_gnn_forward.1} parent=0 // pred_check
    _
  $region11: #{hetero_gnn_forward.1} parent=0 // pred_check_branch
    %15 = sbr.rel (0) target = $region13
  $region12: #{hetero_gnn_forward.1} parent=0 // pred_region
    _
  $region13: #{hetero_gnn_forward.1} parent=0 // pred_fallthru
    _
  // Predicated region
  $region14: #{hetero_gnn_forward.1} parent=0 // pred_check
    _
  $region15: #{hetero_gnn_forward.1} parent=0 // pred_check_branch
    %17 = sbr.rel (0) target = $region17
  $region16: #{hetero_gnn_forward.1} parent=0 // pred_region
    _
  $region17: #{hetero_gnn_forward.1} parent=0 // pred_fallthru
    _
  // Predicated region
  $region18: #{hetero_gnn_forward.1} parent=0 // pred_check
    _
  $region19: #{hetero_gnn_forward.1} parent=0 // pred_check_branch
    %19 = sbr.rel (0) target = $region21
  $region20: #{hetero_gnn_forward.1} parent=0 // pred_region
    _
  $region21: #{hetero_gnn_forward.1} parent=0 // pred_fallthru
    _
  %vm20 = vcmask 523264
  %21 = vst.msk [vmem:[#allocation2] sm:$0xff] %vm20, 0.0
  %22 = vst.msk [vmem:[#allocation2 + $0x8] sm:$0xff] %vm20, 0.0
  %23 = vst.msk [vmem:[#allocation2 + $0x10] sm:$0xff] %vm20, 0.0
  %v24 = vld [vmem:[%s0] sm:$0xff]
  %v25 = vld [vmem:[%s0 + $0x8] sm:$0xf]
  %vm26 = vcmask 48128
  %27 = vst.msk [vmem:[#allocation2] sm:$0xff] %vm26, %v24
  %vm28 = vcmask 44032
  %29 = vst.msk [vmem:[#allocation2 + $0x8] sm:$0xf] %vm28, %v25
  %v30 = vld [vmem:[%s1] sm:$0x1f]
  %32 = vrot.lane.b32.xlu0 %v30, 32
  %v33 = vpop.permute.xlu0 %32
  %vm35 = vcmask 291072
  %36 = vst.msk [vmem:[#allocation2 + $0x10] sm:$0x1f] %vm35, %v33
  %v37 = vld [vmem:[#allocation2] sm:$0xff]
  %v38 = vld [vmem:[#allocation2 + $0x8] sm:$0xff]
  %v39 = vld [vmem:[#allocation2 + $0x10] sm:$0xff]
  %v40 = vld [vmem:[%s2] sm:$0x1]
  %v41 = vld [vmem:[%s2 + $0x1] sm:$0x1]
  %v42 = vlaneseq
  %v43 = vshrl.u32 %v42, 7
  %v44 = vadd.s32 %v43, 8
  %v45 = vadd.s32 %v43, 16
  %v46 = vlaneseq
  %v47 = vshrl.u32 %v46, 7
  %v48 = vsub.s32 0, %v47
  %v49 = vrot.slane %v40, %v48
  %vm50 = vcmp.eq.s32.totalorder %v43, %v49
  %vm51 = vcmp.eq.s32.totalorder %v44, %v49
  %vm52 = vcmp.eq.s32.totalorder %v45, %v49
  %v53 = vsel %vm50, 1.0, 0.0
  %v54 = vsel %vm51, 1.0, 0.0
  %v55 = vsel %vm52, 1.0, 0.0
  %v56 = vlaneseq
  %v57 = vshrl.u32 %v56, 7
  %v58 = vsub.s32 0, %v57
  %v59 = vrot.slane %v41, %v58
  %vm60 = vcmp.eq.s32.totalorder %v43, %v59
  %vm61 = vcmp.eq.s32.totalorder %v44, %v59
  %vm62 = vcmp.eq.s32.totalorder %v45, %v59
  %v63 = vsel %vm60, 1.0, 0.0
  %v64 = vsel %vm61, 1.0, 0.0
  %v65 = vsel %vm62, 1.0, 0.0
  %vm66 = vcmp.lt.s32.totalorder %v43, 12
  %vm67 = vcmp.lt.s32.totalorder %v44, 12
  %vm68 = vcmp.lt.s32.totalorder %v45, 12
  %v69 = vsel %vm66, 1.0, 0.0
  %v70 = vsel %vm67, 1.0, 0.0
  %v71 = vsel %vm68, 1.0, 0.0
  %vm72 = vcmp.ge.s32.totalorder %v43, 16
  %vm73 = vcmp.ge.s32.totalorder %v44, 16
  %vm74 = vcmp.ge.s32.totalorder %v45, 16
  %vm75 = vcmp.lt.s32.totalorder %v43, 21
  %vm76 = vcmp.lt.s32.totalorder %v44, 21
  %vm77 = vcmp.lt.s32.totalorder %v45, 21
  %vm78 = vmand %vm72, %vm75
  %vm79 = vmand %vm73, %vm76
  %vm80 = vmand %vm74, %vm77
  %v81 = vsel %vm78, 1.0, 0.0
  %v82 = vsel %vm79, 1.0, 0.0
  %v83 = vsel %vm80, 1.0, 0.0
  %v84 = vlaneseq
  %v85 = vand.u32 %v84, 127
  %vm86 = vcmp.lt.s32.totalorder %v85, 32
  %v87 = vsel %vm86, %v69, %v81
  %v88 = vsel %vm86, %v70, %v82
  %v89 = vsel %vm86, %v71, %v83
  %v90 = vsel %vm86, 0.083333336, 0.2
  %91 = vmatprep.subr.mxu0 0.0
  %92 = vmatpush1.xpose.msra.mxu0 0.0
  %93 = vmatprep.subr.mxu0 0.0
  %94 = vmatpush1.xpose.msra.mxu0 0.0
  %95 = vmatprep.subr.mxu0 0.0
  %96 = vmatpush1.xpose.msra.mxu0 0.0
  %97 = vmatprep.subr.mxu0 0.0
  %98 = vmatpush1.xpose.msra.mxu0 0.0
  %99 = vmatprep.subr.mxu0 0.0
  %100 = vmatpush1.xpose.msra.mxu0 0.0
  %101 = vmatprep.subr.mxu0 0.0
  %102 = vmatpush1.xpose.msra.mxu0 0.0
  %103 = vmatprep.subr.mxu0 0.0
  %104 = vmatpush1.xpose.msra.mxu0 0.0
  %105 = vmatprep.subr.mxu0 0.0
  %106 = vmatpush1.xpose.msra.mxu0 0.0
  %107 = vmatprep.subr.mxu0 0.0
  %108 = vmatpush1.xpose.msra.mxu0 0.0
  %109 = vmatprep.subr.mxu0 0.0
  %110 = vmatpush1.xpose.msra.mxu0 0.0
  %111 = vmatprep.subr.mxu0 0.0
  %112 = vmatpush1.xpose.msra.mxu0 0.0
  %113 = vmatprep.subr.mxu0 0.0
  %114 = vmatpush1.xpose.msra.mxu0 0.0
  %115 = vmatprep.subr.mxu0 0.0
  %116 = vmatpush1.xpose.msra.mxu0 0.0
  %117 = vmatprep.subr.mxu0 0.0
  %118 = vmatpush1.xpose.msra.mxu0 %v55
  %119 = vmatprep.subr.mxu0 0.0
  %120 = vmatpush1.xpose.msra.mxu0 %v54
  %121 = vmatprep.subr.mxu0 0.0
  %122 = vmatpush1.xpose.msra.mxu0 %v53
  %123 = vmatprep.subr.mxu0 0.0
  %124 = vmatpush2.xpose.msra.mxu0 0.0
  %125 = vmatprep.subr.mxu0 0.0
  %126 = vmatpush2.xpose.msra.mxu0 0.0
  %127 = vmatprep.subr.mxu0 0.0
  %128 = vmatpush2.xpose.msra.mxu0 0.0
  %129 = vmatprep.subr.mxu0 0.0
  %130 = vmatpush2.xpose.msra.mxu0 0.0
  %131 = vmatprep.subr.mxu0 0.0
  %132 = vmatpush2.xpose.msra.mxu0 0.0
  %133 = vmatprep.subr.mxu0 0.0
  %134 = vmatpush2.xpose.msra.mxu0 0.0
  %135 = vmatprep.subr.mxu0 0.0
  %136 = vmatpush2.xpose.msra.mxu0 0.0
  %137 = vmatprep.subr.mxu0 0.0
  %138 = vmatpush2.xpose.msra.mxu0 0.0
  %139 = vmatprep.subr.mxu0 0.0
  %140 = vmatpush2.xpose.msra.mxu0 0.0
  %141 = vmatprep.subr.mxu0 0.0
  %142 = vmatpush2.xpose.msra.mxu0 0.0
  %143 = vmatprep.subr.mxu0 0.0
  %144 = vmatpush2.xpose.msra.mxu0 0.0
  %145 = vmatprep.subr.mxu0 0.0
  %146 = vmatpush2.xpose.msra.mxu0 0.0
  %147 = vmatprep.subr.mxu0 0.0
  %148 = vmatpush2.xpose.msra.mxu0 0.0
  %149 = vmatprep.subr.mxu0 0.0
  %150 = vmatpush2.xpose.msra.mxu0 0.0
  %151 = vmatprep.subr.mxu0 0.0
  %152 = vmatpush2.xpose.msra.mxu0 0.0
  %153 = vmatprep.subr.mxu0 0.0
  %154 = vmatpush2.xpose.msra.mxu0 0.0
  %155 = vmatprep.mubr.f32.mxu0 0.0
  %156 = vmatmul.mubr.f32.gmra.mxu0 %v63
  %v157 = vpop.f32.mrf.mxu0
  %v158 = vadd.f32 0.0, %v157
  %v159 = vpop.f32.mrf.mxu0
  %160 = vmatprep.mubr.f32.mxu0 0.0
  %161 = vmatmul.mubr.f32.gmra.mxu0 %v64
  %v162 = vpop.f32.mrf.mxu0
  %v163 = vadd.f32 0.0, %v162
  %v164 = vpop.f32.mrf.mxu0
  %165 = vmatprep.mubr.f32.mxu0 0.0
  %166 = vmatmul.mubr.f32.gmra.mxu0 %v65
  %v167 = vpop.f32.mrf.mxu0
  %v168 = vadd.f32 0.0, %v167
  %v169 = vpop.f32.mrf.mxu0
  %170 = vdwg.mxu0
  %v171 = vmul.f32 %v69, 0.5
  %v172 = vmul.f32 %v70, 0.5
  %v173 = vmul.f32 %v71, 0.5
  %v174 = vadd.f32 %v171, %v81
  %v175 = vadd.f32 %v172, %v82
  %v176 = vadd.f32 %v173, %v83
  %v177 = vmul.f32 %v158, %v174
  %v178 = vmul.f32 %v163, %v175
  %v179 = vmul.f32 %v168, %v176
  %v180 = vld [vmem:[%s3] sm:$0xff]
  %v181 = vld [vmem:[%s3 + $0x8] sm:$0xff]
  %v182 = vld [vmem:[%s3 + $0x10] sm:$0xff]
  %v183 = vld [vmem:[%s3 + $0x18] sm:$0xff]
  %v184 = vld [vmem:[%s3 + $0x20] sm:$0xff]
  %v185 = vld [vmem:[%s3 + $0x28] sm:$0xff]
  %v186 = vld [vmem:[%s3 + $0x30] sm:$0xff]
  %v187 = vld [vmem:[%s3 + $0x38] sm:$0xff]
  %v188 = vld [vmem:[%s3 + $0x40] sm:$0xff]
  %v189 = vld [vmem:[%s3 + $0x48] sm:$0xff]
  %v190 = vld [vmem:[%s3 + $0x50] sm:$0xff]
  %v191 = vld [vmem:[%s3 + $0x58] sm:$0xff]
  %v192 = vld [vmem:[%s3 + $0x60] sm:$0xff]
  %v193 = vld [vmem:[%s3 + $0x68] sm:$0xff]
  %v194 = vld [vmem:[%s3 + $0x70] sm:$0xff]
  %v195 = vld [vmem:[%s3 + $0x78] sm:$0xff]
  %196 = vmatprep.subr.mxu0 0.0
  %197 = vmatpush1.msra.mxu0 %v195
  %198 = vmatprep.subr.mxu0 0.0
  %199 = vmatpush1.msra.mxu0 %v194
  %200 = vmatprep.subr.mxu0 0.0
  %201 = vmatpush1.msra.mxu0 %v193
  %202 = vmatprep.subr.mxu0 0.0
  %203 = vmatpush1.msra.mxu0 %v192
  %204 = vmatprep.subr.mxu0 0.0
  %205 = vmatpush1.msra.mxu0 %v191
  %206 = vmatprep.subr.mxu0 0.0
  %207 = vmatpush1.msra.mxu0 %v190
  %208 = vmatprep.subr.mxu0 0.0
  %209 = vmatpush1.msra.mxu0 %v189
  %210 = vmatprep.subr.mxu0 0.0
  %211 = vmatpush1.msra.mxu0 %v188
  %212 = vmatprep.subr.mxu0 0.0
  %213 = vmatpush1.msra.mxu0 %v187
  %214 = vmatprep.subr.mxu0 0.0
  %215 = vmatpush1.msra.mxu0 %v186
  %216 = vmatprep.subr.mxu0 0.0
  %217 = vmatpush1.msra.mxu0 %v185
  %218 = vmatprep.subr.mxu0 0.0
  %219 = vmatpush1.msra.mxu0 %v184
  %220 = vmatprep.subr.mxu0 0.0
  %221 = vmatpush1.msra.mxu0 %v183
  %222 = vmatprep.subr.mxu0 0.0
  %223 = vmatpush1.msra.mxu0 %v182
  %224 = vmatprep.subr.mxu0 0.0
  %225 = vmatpush1.msra.mxu0 %v181
  %226 = vmatprep.subr.mxu0 0.0
  %227 = vmatpush1.msra.mxu0 %v180
  %228 = vmatprep.subr.mxu0 0.0
  %229 = vmatpush2.msra.mxu0 0.0
  %230 = vmatprep.subr.mxu0 0.0
  %231 = vmatpush2.msra.mxu0 0.0
  %232 = vmatprep.subr.mxu0 0.0
  %233 = vmatpush2.msra.mxu0 0.0
  %234 = vmatprep.subr.mxu0 0.0
  %235 = vmatpush2.msra.mxu0 0.0
  %236 = vmatprep.subr.mxu0 0.0
  %237 = vmatpush2.msra.mxu0 0.0
  %238 = vmatprep.subr.mxu0 0.0
  %239 = vmatpush2.msra.mxu0 0.0
  %240 = vmatprep.subr.mxu0 0.0
  %241 = vmatpush2.msra.mxu0 0.0
  %242 = vmatprep.subr.mxu0 0.0
  %243 = vmatpush2.msra.mxu0 0.0
  %244 = vmatprep.subr.mxu0 0.0
  %245 = vmatpush2.msra.mxu0 0.0
  %246 = vmatprep.subr.mxu0 0.0
  %247 = vmatpush2.msra.mxu0 0.0
  %248 = vmatprep.subr.mxu0 0.0
  %249 = vmatpush2.msra.mxu0 0.0
  %250 = vmatprep.subr.mxu0 0.0
  %251 = vmatpush2.msra.mxu0 0.0
  %252 = vmatprep.subr.mxu0 0.0
  %253 = vmatpush2.msra.mxu0 0.0
  %254 = vmatprep.subr.mxu0 0.0
  %255 = vmatpush2.msra.mxu0 0.0
  %256 = vmatprep.subr.mxu0 0.0
  %257 = vmatpush2.msra.mxu0 0.0
  %258 = vmatprep.subr.mxu0 0.0
  %259 = vmatpush2.msra.mxu0 0.0
  %260 = vmatprep.mubr.f32.mxu0 0.0
  %261 = vmatmul.mubr.f32.gmra.mxu0 %v63
  %v262 = vpop.f32.mrf.mxu0
  %v263 = vadd.f32 0.0, %v262
  %v264 = vpop.f32.mrf.mxu0
  %265 = vmatprep.mubr.f32.mxu0 0.0
  %266 = vmatmul.mubr.f32.gmra.mxu0 %v64
  %v267 = vpop.f32.mrf.mxu0
  %v268 = vadd.f32 0.0, %v267
  %v269 = vpop.f32.mrf.mxu0
  %270 = vmatprep.mubr.f32.mxu0 0.0
  %271 = vmatmul.mubr.f32.gmra.mxu0 %v65
  %v272 = vpop.f32.mrf.mxu0
  %v273 = vadd.f32 0.0, %v272
  %v274 = vpop.f32.mrf.mxu0
  %275 = vdwg.mxu0
  %v276 = vld [vmem:[%s4 + $0xd0] sm:$0xff]
  %v277 = vld [vmem:[%s4 + $0xd8] sm:$0xff]
  %v278 = vld [vmem:[%s4] sm:$0xff]
  %v279 = vld [vmem:[%s4 + $0x8] sm:$0xff]
  %v280 = vld [vmem:[%s4 + $0x10] sm:$0xff]
  %v281 = vld [vmem:[%s4 + $0x18] sm:$0xff]
  %v282 = vld [vmem:[%s4 + $0x20] sm:$0xff]
  %v283 = vld [vmem:[%s4 + $0x28] sm:$0xff]
  %v284 = vld [vmem:[%s4 + $0x30] sm:$0xff]
  %v285 = vld [vmem:[%s4 + $0x38] sm:$0xff]
  %v286 = vld [vmem:[%s4 + $0xc0] sm:$0xff]
  %v288 = vsel %vm20, %v37, 0
  %v291 = vsel %vm20, %v38, 0
  %v294 = vsel %vm20, %v39, 0
  %296 = vmatprep.subr.mxu0 0.0
  %297 = vmatpush1.msra.mxu0 0.0
  %298 = vmatprep.subr.mxu0 0.0
  %299 = vmatpush1.msra.mxu0 0.0
  %300 = vmatprep.subr.mxu0 0.0
  %301 = vmatpush1.msra.mxu0 0.0
  %302 = vmatprep.subr.mxu0 0.0
  %303 = vmatpush1.msra.mxu0 0.0
  %304 = vmatprep.subr.mxu0 0.0
  %305 = vmatpush1.msra.mxu0 0.0
  %306 = vmatprep.subr.mxu0 0.0
  %307 = vmatpush1.msra.mxu0 0.0
  %308 = vmatprep.subr.mxu0 0.0
  %309 = vmatpush1.msra.mxu0 0.0
  %310 = vmatprep.subr.mxu0 0.0
  %311 = vmatpush1.msra.mxu0 0.0
  %312 = vmatprep.subr.mxu0 0.0
  %313 = vmatpush1.msra.mxu0 %v285
  %314 = vmatprep.subr.mxu0 0.0
  %315 = vmatpush1.msra.mxu0 %v284
  %316 = vmatprep.subr.mxu0 0.0
  %317 = vmatpush1.msra.mxu0 %v283
  %318 = vmatprep.subr.mxu0 0.0
  %319 = vmatpush1.msra.mxu0 %v282
  %320 = vmatprep.subr.mxu0 0.0
  %321 = vmatpush1.msra.mxu0 %v281
  %322 = vmatprep.subr.mxu0 0.0
  %323 = vmatpush1.msra.mxu0 %v280
  %324 = vmatprep.subr.mxu0 0.0
  %325 = vmatpush1.msra.mxu0 %v279
  %326 = vmatprep.subr.mxu0 0.0
  %327 = vmatpush1.msra.mxu0 %v278
  %328 = vmatprep.subr.mxu0 0.0
  %329 = vmatpush2.msra.mxu0 0.0
  %330 = vmatprep.subr.mxu0 0.0
  %331 = vmatpush2.msra.mxu0 0.0
  %332 = vmatprep.subr.mxu0 0.0
  %333 = vmatpush2.msra.mxu0 0.0
  %334 = vmatprep.subr.mxu0 0.0
  %335 = vmatpush2.msra.mxu0 0.0
  %336 = vmatprep.subr.mxu0 0.0
  %337 = vmatpush2.msra.mxu0 0.0
  %338 = vmatprep.subr.mxu0 0.0
  %339 = vmatpush2.msra.mxu0 0.0
  %340 = vmatprep.subr.mxu0 0.0
  %341 = vmatpush2.msra.mxu0 0.0
  %342 = vmatprep.subr.mxu0 0.0
  %343 = vmatpush2.msra.mxu0 0.0
  %344 = vmatprep.subr.mxu0 0.0
  %345 = vmatpush2.msra.mxu0 0.0
  %346 = vmatprep.subr.mxu0 0.0
  %347 = vmatpush2.msra.mxu0 0.0
  %348 = vmatprep.subr.mxu0 0.0
  %349 = vmatpush2.msra.mxu0 0.0
  %350 = vmatprep.subr.mxu0 0.0
  %351 = vmatpush2.msra.mxu0 0.0
  %352 = vmatprep.subr.mxu0 0.0
  %353 = vmatpush2.msra.mxu0 0.0
  %354 = vmatprep.subr.mxu0 0.0
  %355 = vmatpush2.msra.mxu0 0.0
  %356 = vmatprep.subr.mxu0 0.0
  %357 = vmatpush2.msra.mxu0 0.0
  %358 = vmatprep.subr.mxu0 0.0
  %359 = vmatpush2.msra.mxu0 0.0
  %360 = vmatprep.mubr.f32.mxu0 0.0
  %361 = vmatmul.mubr.f32.gmra.mxu0 %v288
  %v362 = vpop.f32.mrf.mxu0
  %v363 = vadd.f32 0.0, %v362
  %v364 = vpop.f32.mrf.mxu0
  %365 = vmatprep.mubr.f32.mxu0 0.0
  %366 = vmatmul.mubr.f32.gmra.mxu0 %v291
  %v367 = vpop.f32.mrf.mxu0
  %v368 = vadd.f32 0.0, %v367
  %v369 = vpop.f32.mrf.mxu0
  %370 = vmatprep.mubr.f32.mxu0 0.0
  %371 = vmatmul.mubr.f32.gmra.mxu0 %v294
  %v372 = vpop.f32.mrf.mxu0
  %v373 = vadd.f32 0.0, %v372
  %v374 = vpop.f32.mrf.mxu0
  %375 = vdwg.mxu0
  %vm376 = vcmask 64512
  %v378 = vsel %vm376, %v263, 0
  %v381 = vsel %vm376, %v268, 0
  %v384 = vsel %vm376, %v273, 0
  %386 = vmatprep.subr.mxu0 0.0
  %387 = vmatpush1.msra.mxu0 0.0
  %388 = vmatprep.subr.mxu0 0.0
  %389 = vmatpush1.msra.mxu0 0.0
  %390 = vmatprep.subr.mxu0 0.0
  %391 = vmatpush1.msra.mxu0 0.0
  %392 = vmatprep.subr.mxu0 0.0
  %393 = vmatpush1.msra.mxu0 0.0
  %394 = vmatprep.subr.mxu0 0.0
  %395 = vmatpush1.msra.mxu0 0.0
  %396 = vmatprep.subr.mxu0 0.0
  %397 = vmatpush1.msra.mxu0 0.0
  %398 = vmatprep.subr.mxu0 0.0
  %399 = vmatpush1.msra.mxu0 0.0
  %400 = vmatprep.subr.mxu0 0.0
  %401 = vmatpush1.msra.mxu0 0.0
  %402 = vmatprep.subr.mxu0 0.0
  %403 = vmatpush1.msra.mxu0 0.0
  %404 = vmatprep.subr.mxu0 0.0
  %405 = vmatpush1.msra.mxu0 0.0
  %406 = vmatprep.subr.mxu0 0.0
  %407 = vmatpush1.msra.mxu0 0.0
  %408 = vmatprep.subr.mxu0 0.0
  %409 = vmatpush1.msra.mxu0 0.0
  %410 = vmatprep.subr.mxu0 0.0
  %411 = vmatpush1.msra.mxu0 0.0
  %412 = vmatprep.subr.mxu0 0.0
  %413 = vmatpush1.msra.mxu0 0.0
  %414 = vmatprep.subr.mxu0 0.0
  %415 = vmatpush1.msra.mxu0 0.0
  %416 = vmatprep.subr.mxu0 0.0
  %417 = vmatpush1.msra.mxu0 %v286
  %418 = vmatprep.subr.mxu0 0.0
  %419 = vmatpush2.msra.mxu0 0.0
  %420 = vmatprep.subr.mxu0 0.0
  %421 = vmatpush2.msra.mxu0 0.0
  %422 = vmatprep.subr.mxu0 0.0
  %423 = vmatpush2.msra.mxu0 0.0
  %424 = vmatprep.subr.mxu0 0.0
  %425 = vmatpush2.msra.mxu0 0.0
  %426 = vmatprep.subr.mxu0 0.0
  %427 = vmatpush2.msra.mxu0 0.0
  %428 = vmatprep.subr.mxu0 0.0
  %429 = vmatpush2.msra.mxu0 0.0
  %430 = vmatprep.subr.mxu0 0.0
  %431 = vmatpush2.msra.mxu0 0.0
  %432 = vmatprep.subr.mxu0 0.0
  %433 = vmatpush2.msra.mxu0 0.0
  %434 = vmatprep.subr.mxu0 0.0
  %435 = vmatpush2.msra.mxu0 0.0
  %436 = vmatprep.subr.mxu0 0.0
  %437 = vmatpush2.msra.mxu0 0.0
  %438 = vmatprep.subr.mxu0 0.0
  %439 = vmatpush2.msra.mxu0 0.0
  %440 = vmatprep.subr.mxu0 0.0
  %441 = vmatpush2.msra.mxu0 0.0
  %442 = vmatprep.subr.mxu0 0.0
  %443 = vmatpush2.msra.mxu0 0.0
  %444 = vmatprep.subr.mxu0 0.0
  %445 = vmatpush2.msra.mxu0 0.0
  %446 = vmatprep.subr.mxu0 0.0
  %447 = vmatpush2.msra.mxu0 0.0
  %448 = vmatprep.subr.mxu0 0.0
  %449 = vmatpush2.msra.mxu0 0.0
  %450 = vmatprep.mubr.f32.mxu0 0.0
  %451 = vmatmul.mubr.f32.gmra.mxu0 %v378
  %v452 = vpop.f32.mrf.mxu0
  %v453 = vadd.f32 0.0, %v452
  %v454 = vpop.f32.mrf.mxu0
  %455 = vmatprep.mubr.f32.mxu0 0.0
  %456 = vmatmul.mubr.f32.gmra.mxu0 %v381
  %v457 = vpop.f32.mrf.mxu0
  %v458 = vadd.f32 0.0, %v457
  %v459 = vpop.f32.mrf.mxu0
  %460 = vmatprep.mubr.f32.mxu0 0.0
  %461 = vmatmul.mubr.f32.gmra.mxu0 %v384
  %v462 = vpop.f32.mrf.mxu0
  %v463 = vadd.f32 0.0, %v462
  %v464 = vpop.f32.mrf.mxu0
  %465 = vdwg.mxu0
  %vm466 = vcmask 195584
  %v468 = vsel %vm466, %v177, 0
  %v471 = vsel %vm466, %v178, 0
  %v474 = vsel %vm466, %v179, 0
  %476 = vmatprep.subr.mxu0 0.0
  %477 = vmatpush1.msra.mxu0 0.0
  %478 = vmatprep.subr.mxu0 0.0
  %479 = vmatpush1.msra.mxu0 0.0
  %480 = vmatprep.subr.mxu0 0.0
  %481 = vmatpush1.msra.mxu0 0.0
  %482 = vmatprep.subr.mxu0 0.0
  %483 = vmatpush1.msra.mxu0 0.0
  %484 = vmatprep.subr.mxu0 0.0
  %485 = vmatpush1.msra.mxu0 0.0
  %486 = vmatprep.subr.mxu0 0.0
  %487 = vmatpush1.msra.mxu0 0.0
  %488 = vmatprep.subr.mxu0 0.0
  %489 = vmatpush1.msra.mxu0 0.0
  %490 = vmatprep.subr.mxu0 0.0
  %491 = vmatpush1.msra.mxu0 0.0
  %492 = vmatprep.subr.mxu0 0.0
  %493 = vmatpush1.msra.mxu0 0.0
  %494 = vmatprep.subr.mxu0 0.0
  %495 = vmatpush1.msra.mxu0 0.0
  %496 = vmatprep.subr.mxu0 0.0
  %497 = vmatpush1.msra.mxu0 0.0
  %498 = vmatprep.subr.mxu0 0.0
  %499 = vmatpush1.msra.mxu0 0.0
  %500 = vmatprep.subr.mxu0 0.0
  %501 = vmatpush1.msra.mxu0 0.0
  %502 = vmatprep.subr.mxu0 0.0
  %503 = vmatpush1.msra.mxu0 %v373
  %504 = vmatprep.subr.mxu0 0.0
  %505 = vmatpush1.msra.mxu0 %v368
  %506 = vmatprep.subr.mxu0 0.0
  %507 = vmatpush1.msra.mxu0 %v363
  %508 = vmatprep.subr.mxu0 0.0
  %509 = vmatpush2.msra.mxu0 0.0
  %510 = vmatprep.subr.mxu0 0.0
  %511 = vmatpush2.msra.mxu0 0.0
  %512 = vmatprep.subr.mxu0 0.0
  %513 = vmatpush2.msra.mxu0 0.0
  %514 = vmatprep.subr.mxu0 0.0
  %515 = vmatpush2.msra.mxu0 0.0
  %516 = vmatprep.subr.mxu0 0.0
  %517 = vmatpush2.msra.mxu0 0.0
  %518 = vmatprep.subr.mxu0 0.0
  %519 = vmatpush2.msra.mxu0 0.0
  %520 = vmatprep.subr.mxu0 0.0
  %521 = vmatpush2.msra.mxu0 0.0
  %522 = vmatprep.subr.mxu0 0.0
  %523 = vmatpush2.msra.mxu0 0.0
  %524 = vmatprep.subr.mxu0 0.0
  %525 = vmatpush2.msra.mxu0 0.0
  %526 = vmatprep.subr.mxu0 0.0
  %527 = vmatpush2.msra.mxu0 0.0
  %528 = vmatprep.subr.mxu0 0.0
  %529 = vmatpush2.msra.mxu0 0.0
  %530 = vmatprep.subr.mxu0 0.0
  %531 = vmatpush2.msra.mxu0 0.0
  %532 = vmatprep.subr.mxu0 0.0
  %533 = vmatpush2.msra.mxu0 0.0
  %534 = vmatprep.subr.mxu0 0.0
  %535 = vmatpush2.msra.mxu0 0.0
  %536 = vmatprep.subr.mxu0 0.0
  %537 = vmatpush2.msra.mxu0 0.0
  %538 = vmatprep.subr.mxu0 0.0
  %539 = vmatpush2.msra.mxu0 0.0
  %540 = vmatprep.mubr.f32.mxu0 0.0
  %541 = vmatmul.mubr.f32.gmra.mxu0 %v468
  %v542 = vpop.f32.mrf.mxu0
  %v543 = vadd.f32 %v453, %v542
  %v544 = vpop.f32.mrf.mxu0
  %545 = vmatprep.mubr.f32.mxu0 0.0
  %546 = vmatmul.mubr.f32.gmra.mxu0 %v471
  %v547 = vpop.f32.mrf.mxu0
  %v548 = vadd.f32 %v458, %v547
  %v549 = vpop.f32.mrf.mxu0
  %550 = vmatprep.mubr.f32.mxu0 0.0
  %551 = vmatmul.mubr.f32.gmra.mxu0 %v474
  %v552 = vpop.f32.mrf.mxu0
  %v553 = vadd.f32 %v463, %v552
  %v554 = vpop.f32.mrf.mxu0
  %555 = vdwg.mxu0
  %v556 = vlaneseq
  %v557 = vshrl.u32 %v556, 7
  %v558 = vsub.s32 0, %v557
  %v559 = vrot.slane %v276, %v558
  %v560 = vadd.f32 %v543, %v559
  %v561 = vadd.f32 %v548, %v559
  %v562 = vadd.f32 %v553, %v559
  %v563 = vmul.f32 %v560, %v87
  %v564 = vmul.f32 %v561, %v88
  %v565 = vmul.f32 %v562, %v89
  %v566 = vsel %vm20, %v563, 0.0
  %v567 = vsel %vm20, %v564, 0.0
  %v568 = vadd.f32 %v566, %v567
  %v569 = vsel %vm20, %v565, 0.0
  %v570 = vadd.f32 %v568, %v569
  %v571 = vrot.slane %v570, 4
  %v572 = vadd.f32 %v570, %v571
  %v573 = vrot.slane %v572, 2
  %v574 = vadd.f32 %v572, %v573
  %v575 = vrot.slane %v574, 1
  %v576 = vadd.f32 %v574, %v575
  %v577 = vmul.f32 %v576, %v90
  %v578 = vsub.f32 %v563, %v577
  %v579 = vsub.f32 %v564, %v577
  %v580 = vsub.f32 %v565, %v577
  %v581 = vmul.f32 %v578, %v87
  %v582 = vmul.f32 %v579, %v88
  %v583 = vmul.f32 %v580, %v89
  %v584 = vmul.f32 %v581, %v581
  %v585 = vmul.f32 %v582, %v582
  %v586 = vmul.f32 %v583, %v583
  %v587 = vsel %vm20, %v584, 0.0
  %v588 = vsel %vm20, %v585, 0.0
  %v589 = vadd.f32 %v587, %v588
  %v590 = vsel %vm20, %v586, 0.0
  %v591 = vadd.f32 %v589, %v590
  %v592 = vrot.slane %v591, 4
  %v593 = vadd.f32 %v591, %v592
  %v594 = vrot.slane %v593, 2
  %v595 = vadd.f32 %v593, %v594
  %v596 = vrot.slane %v595, 1
  %v597 = vadd.f32 %v595, %v596
  %v598 = vmul.f32 %v597, %v90
  %v599 = vadd.f32 %v598, 1.0
  %v600 = vrsqrt.pop %v599
  %v601 = vmul.f32 %v581, %v600
  %v602 = vmul.f32 %v582, %v600
  %v603 = vmul.f32 %v583, %v600
  %v604 = vlaneseq
  %v605 = vshrl.u32 %v604, 7
  %v606 = vsub.s32 2, %v605
  %v607 = vrot.slane %v276, %v606
  %v608 = vmul.f32 %v607, %v601
  %v609 = vmul.f32 %v607, %v602
  %v610 = vmul.f32 %v607, %v603
  %v611 = vlaneseq
  %v612 = vshrl.u32 %v611, 7
  %v613 = vsub.s32 3, %v612
  %v614 = vrot.slane %v276, %v613
  %v615 = vadd.f32 %v608, %v614
  %v616 = vadd.f32 %v609, %v614
  %v617 = vadd.f32 %v610, %v614
  %vm618 = vcmp.gt.f32.partialorder %v615, 0.0
  %vm619 = vcmp.gt.f32.partialorder %v616, 0.0
  %vm620 = vcmp.gt.f32.partialorder %v617, 0.0
  %v621 = vlaneseq
  %v622 = vshrl.u32 %v621, 7
  %v623 = vsub.s32 6, %v622
  %v624 = vrot.slane %v276, %v623
  %v625 = vmul.f32 %v624, %v615
  %v626 = vmul.f32 %v624, %v616
  %v627 = vmul.f32 %v624, %v617
  %v628 = vsel %vm618, %v615, %v625
  %v629 = vsel %vm619, %v616, %v626
  %v630 = vsel %vm620, %v617, %v627
  %v631 = vmul.f32 %v628, %v87
  %v632 = vmul.f32 %v629, %v88
  %v633 = vmul.f32 %v630, %v89
  %v634 = vld [vmem:[%s4 + $0x40] sm:$0xff]
  %v635 = vld [vmem:[%s4 + $0x48] sm:$0xff]
  %v636 = vld [vmem:[%s4 + $0x50] sm:$0xff]
  %v637 = vld [vmem:[%s4 + $0x58] sm:$0xff]
  %v638 = vld [vmem:[%s4 + $0x60] sm:$0xff]
  %v639 = vld [vmem:[%s4 + $0x68] sm:$0xff]
  %v640 = vld [vmem:[%s4 + $0x70] sm:$0xff]
  %v641 = vld [vmem:[%s4 + $0x78] sm:$0xff]
  %v642 = vld [vmem:[%s4 + $0xc8] sm:$0xff]
  %v644 = vsel %vm20, %v631, 0
  %v647 = vsel %vm20, %v632, 0
  %v650 = vsel %vm20, %v633, 0
  %652 = vmatprep.subr.mxu0 0.0
  %653 = vmatpush1.msra.mxu0 0.0
  %654 = vmatprep.subr.mxu0 0.0
  %655 = vmatpush1.msra.mxu0 0.0
  %656 = vmatprep.subr.mxu0 0.0
  %657 = vmatpush1.msra.mxu0 0.0
  %658 = vmatprep.subr.mxu0 0.0
  %659 = vmatpush1.msra.mxu0 0.0
  %660 = vmatprep.subr.mxu0 0.0
  %661 = vmatpush1.msra.mxu0 0.0
  %662 = vmatprep.subr.mxu0 0.0
  %663 = vmatpush1.msra.mxu0 0.0
  %664 = vmatprep.subr.mxu0 0.0
  %665 = vmatpush1.msra.mxu0 0.0
  %666 = vmatprep.subr.mxu0 0.0
  %667 = vmatpush1.msra.mxu0 0.0
  %668 = vmatprep.subr.mxu0 0.0
  %669 = vmatpush1.msra.mxu0 %v641
  %670 = vmatprep.subr.mxu0 0.0
  %671 = vmatpush1.msra.mxu0 %v640
  %672 = vmatprep.subr.mxu0 0.0
  %673 = vmatpush1.msra.mxu0 %v639
  %674 = vmatprep.subr.mxu0 0.0
  %675 = vmatpush1.msra.mxu0 %v638
  %676 = vmatprep.subr.mxu0 0.0
  %677 = vmatpush1.msra.mxu0 %v637
  %678 = vmatprep.subr.mxu0 0.0
  %679 = vmatpush1.msra.mxu0 %v636
  %680 = vmatprep.subr.mxu0 0.0
  %681 = vmatpush1.msra.mxu0 %v635
  %682 = vmatprep.subr.mxu0 0.0
  %683 = vmatpush1.msra.mxu0 %v634
  %684 = vmatprep.subr.mxu0 0.0
  %685 = vmatpush2.msra.mxu0 0.0
  %686 = vmatprep.subr.mxu0 0.0
  %687 = vmatpush2.msra.mxu0 0.0
  %688 = vmatprep.subr.mxu0 0.0
  %689 = vmatpush2.msra.mxu0 0.0
  %690 = vmatprep.subr.mxu0 0.0
  %691 = vmatpush2.msra.mxu0 0.0
  %692 = vmatprep.subr.mxu0 0.0
  %693 = vmatpush2.msra.mxu0 0.0
  %694 = vmatprep.subr.mxu0 0.0
  %695 = vmatpush2.msra.mxu0 0.0
  %696 = vmatprep.subr.mxu0 0.0
  %697 = vmatpush2.msra.mxu0 0.0
  %698 = vmatprep.subr.mxu0 0.0
  %699 = vmatpush2.msra.mxu0 0.0
  %700 = vmatprep.subr.mxu0 0.0
  %701 = vmatpush2.msra.mxu0 0.0
  %702 = vmatprep.subr.mxu0 0.0
  %703 = vmatpush2.msra.mxu0 0.0
  %704 = vmatprep.subr.mxu0 0.0
  %705 = vmatpush2.msra.mxu0 0.0
  %706 = vmatprep.subr.mxu0 0.0
  %707 = vmatpush2.msra.mxu0 0.0
  %708 = vmatprep.subr.mxu0 0.0
  %709 = vmatpush2.msra.mxu0 0.0
  %710 = vmatprep.subr.mxu0 0.0
  %711 = vmatpush2.msra.mxu0 0.0
  %712 = vmatprep.subr.mxu0 0.0
  %713 = vmatpush2.msra.mxu0 0.0
  %714 = vmatprep.subr.mxu0 0.0
  %715 = vmatpush2.msra.mxu0 0.0
  %716 = vmatprep.mubr.f32.mxu0 0.0
  %717 = vmatmul.mubr.f32.gmra.mxu0 %v644
  %v718 = vpop.f32.mrf.mxu0
  %v719 = vadd.f32 0.0, %v718
  %v720 = vpop.f32.mrf.mxu0
  %721 = vmatprep.mubr.f32.mxu0 0.0
  %722 = vmatmul.mubr.f32.gmra.mxu0 %v647
  %v723 = vpop.f32.mrf.mxu0
  %v724 = vadd.f32 0.0, %v723
  %v725 = vpop.f32.mrf.mxu0
  %726 = vmatprep.mubr.f32.mxu0 0.0
  %727 = vmatmul.mubr.f32.gmra.mxu0 %v650
  %v728 = vpop.f32.mrf.mxu0
  %v729 = vadd.f32 0.0, %v728
  %v730 = vpop.f32.mrf.mxu0
  %731 = vdwg.mxu0
  %732 = vmatprep.subr.mxu0 0.0
  %733 = vmatpush1.msra.mxu0 0.0
  %734 = vmatprep.subr.mxu0 0.0
  %735 = vmatpush1.msra.mxu0 0.0
  %736 = vmatprep.subr.mxu0 0.0
  %737 = vmatpush1.msra.mxu0 0.0
  %738 = vmatprep.subr.mxu0 0.0
  %739 = vmatpush1.msra.mxu0 0.0
  %740 = vmatprep.subr.mxu0 0.0
  %741 = vmatpush1.msra.mxu0 0.0
  %742 = vmatprep.subr.mxu0 0.0
  %743 = vmatpush1.msra.mxu0 0.0
  %744 = vmatprep.subr.mxu0 0.0
  %745 = vmatpush1.msra.mxu0 0.0
  %746 = vmatprep.subr.mxu0 0.0
  %747 = vmatpush1.msra.mxu0 0.0
  %748 = vmatprep.subr.mxu0 0.0
  %749 = vmatpush1.msra.mxu0 0.0
  %750 = vmatprep.subr.mxu0 0.0
  %751 = vmatpush1.msra.mxu0 0.0
  %752 = vmatprep.subr.mxu0 0.0
  %753 = vmatpush1.msra.mxu0 0.0
  %754 = vmatprep.subr.mxu0 0.0
  %755 = vmatpush1.msra.mxu0 0.0
  %756 = vmatprep.subr.mxu0 0.0
  %757 = vmatpush1.msra.mxu0 0.0
  %758 = vmatprep.subr.mxu0 0.0
  %759 = vmatpush1.msra.mxu0 0.0
  %760 = vmatprep.subr.mxu0 0.0
  %761 = vmatpush1.msra.mxu0 0.0
  %762 = vmatprep.subr.mxu0 0.0
  %763 = vmatpush1.msra.mxu0 %v642
  %764 = vmatprep.subr.mxu0 0.0
  %765 = vmatpush2.msra.mxu0 0.0
  %766 = vmatprep.subr.mxu0 0.0
  %767 = vmatpush2.msra.mxu0 0.0
  %768 = vmatprep.subr.mxu0 0.0
  %769 = vmatpush2.msra.mxu0 0.0
  %770 = vmatprep.subr.mxu0 0.0
  %771 = vmatpush2.msra.mxu0 0.0
  %772 = vmatprep.subr.mxu0 0.0
  %773 = vmatpush2.msra.mxu0 0.0
  %774 = vmatprep.subr.mxu0 0.0
  %775 = vmatpush2.msra.mxu0 0.0
  %776 = vmatprep.subr.mxu0 0.0
  %777 = vmatpush2.msra.mxu0 0.0
  %778 = vmatprep.subr.mxu0 0.0
  %779 = vmatpush2.msra.mxu0 0.0
  %780 = vmatprep.subr.mxu0 0.0
  %781 = vmatpush2.msra.mxu0 0.0
  %782 = vmatprep.subr.mxu0 0.0
  %783 = vmatpush2.msra.mxu0 0.0
  %784 = vmatprep.subr.mxu0 0.0
  %785 = vmatpush2.msra.mxu0 0.0
  %786 = vmatprep.subr.mxu0 0.0
  %787 = vmatpush2.msra.mxu0 0.0
  %788 = vmatprep.subr.mxu0 0.0
  %789 = vmatpush2.msra.mxu0 0.0
  %790 = vmatprep.subr.mxu0 0.0
  %791 = vmatpush2.msra.mxu0 0.0
  %792 = vmatprep.subr.mxu0 0.0
  %793 = vmatpush2.msra.mxu0 0.0
  %794 = vmatprep.subr.mxu0 0.0
  %795 = vmatpush2.msra.mxu0 0.0
  %796 = vmatprep.mubr.f32.mxu0 0.0
  %797 = vmatmul.mubr.f32.gmra.mxu0 %v378
  %v798 = vpop.f32.mrf.mxu0
  %v799 = vadd.f32 0.0, %v798
  %v800 = vpop.f32.mrf.mxu0
  %801 = vmatprep.mubr.f32.mxu0 0.0
  %802 = vmatmul.mubr.f32.gmra.mxu0 %v381
  %v803 = vpop.f32.mrf.mxu0
  %v804 = vadd.f32 0.0, %v803
  %v805 = vpop.f32.mrf.mxu0
  %806 = vmatprep.mubr.f32.mxu0 0.0
  %807 = vmatmul.mubr.f32.gmra.mxu0 %v384
  %v808 = vpop.f32.mrf.mxu0
  %v809 = vadd.f32 0.0, %v808
  %v810 = vpop.f32.mrf.mxu0
  %811 = vdwg.mxu0
  %812 = vmatprep.subr.mxu0 0.0
  %813 = vmatpush1.msra.mxu0 0.0
  %814 = vmatprep.subr.mxu0 0.0
  %815 = vmatpush1.msra.mxu0 0.0
  %816 = vmatprep.subr.mxu0 0.0
  %817 = vmatpush1.msra.mxu0 0.0
  %818 = vmatprep.subr.mxu0 0.0
  %819 = vmatpush1.msra.mxu0 0.0
  %820 = vmatprep.subr.mxu0 0.0
  %821 = vmatpush1.msra.mxu0 0.0
  %822 = vmatprep.subr.mxu0 0.0
  %823 = vmatpush1.msra.mxu0 0.0
  %824 = vmatprep.subr.mxu0 0.0
  %825 = vmatpush1.msra.mxu0 0.0
  %826 = vmatprep.subr.mxu0 0.0
  %827 = vmatpush1.msra.mxu0 0.0
  %828 = vmatprep.subr.mxu0 0.0
  %829 = vmatpush1.msra.mxu0 0.0
  %830 = vmatprep.subr.mxu0 0.0
  %831 = vmatpush1.msra.mxu0 0.0
  %832 = vmatprep.subr.mxu0 0.0
  %833 = vmatpush1.msra.mxu0 0.0
  %834 = vmatprep.subr.mxu0 0.0
  %835 = vmatpush1.msra.mxu0 0.0
  %836 = vmatprep.subr.mxu0 0.0
  %837 = vmatpush1.msra.mxu0 0.0
  %838 = vmatprep.subr.mxu0 0.0
  %839 = vmatpush1.msra.mxu0 %v729
  %840 = vmatprep.subr.mxu0 0.0
  %841 = vmatpush1.msra.mxu0 %v724
  %842 = vmatprep.subr.mxu0 0.0
  %843 = vmatpush1.msra.mxu0 %v719
  %844 = vmatprep.subr.mxu0 0.0
  %845 = vmatpush2.msra.mxu0 0.0
  %846 = vmatprep.subr.mxu0 0.0
  %847 = vmatpush2.msra.mxu0 0.0
  %848 = vmatprep.subr.mxu0 0.0
  %849 = vmatpush2.msra.mxu0 0.0
  %850 = vmatprep.subr.mxu0 0.0
  %851 = vmatpush2.msra.mxu0 0.0
  %852 = vmatprep.subr.mxu0 0.0
  %853 = vmatpush2.msra.mxu0 0.0
  %854 = vmatprep.subr.mxu0 0.0
  %855 = vmatpush2.msra.mxu0 0.0
  %856 = vmatprep.subr.mxu0 0.0
  %857 = vmatpush2.msra.mxu0 0.0
  %858 = vmatprep.subr.mxu0 0.0
  %859 = vmatpush2.msra.mxu0 0.0
  %860 = vmatprep.subr.mxu0 0.0
  %861 = vmatpush2.msra.mxu0 0.0
  %862 = vmatprep.subr.mxu0 0.0
  %863 = vmatpush2.msra.mxu0 0.0
  %864 = vmatprep.subr.mxu0 0.0
  %865 = vmatpush2.msra.mxu0 0.0
  %866 = vmatprep.subr.mxu0 0.0
  %867 = vmatpush2.msra.mxu0 0.0
  %868 = vmatprep.subr.mxu0 0.0
  %869 = vmatpush2.msra.mxu0 0.0
  %870 = vmatprep.subr.mxu0 0.0
  %871 = vmatpush2.msra.mxu0 0.0
  %872 = vmatprep.subr.mxu0 0.0
  %873 = vmatpush2.msra.mxu0 0.0
  %874 = vmatprep.subr.mxu0 0.0
  %875 = vmatpush2.msra.mxu0 0.0
  %876 = vmatprep.mubr.f32.mxu0 0.0
  %877 = vmatmul.mubr.f32.gmra.mxu0 %v468
  %v878 = vpop.f32.mrf.mxu0
  %v879 = vadd.f32 %v799, %v878
  %v880 = vpop.f32.mrf.mxu0
  %881 = vmatprep.mubr.f32.mxu0 0.0
  %882 = vmatmul.mubr.f32.gmra.mxu0 %v471
  %v883 = vpop.f32.mrf.mxu0
  %v884 = vadd.f32 %v804, %v883
  %v885 = vpop.f32.mrf.mxu0
  %886 = vmatprep.mubr.f32.mxu0 0.0
  %887 = vmatmul.mubr.f32.gmra.mxu0 %v474
  %v888 = vpop.f32.mrf.mxu0
  %v889 = vadd.f32 %v809, %v888
  %v890 = vpop.f32.mrf.mxu0
  %891 = vdwg.mxu0
  %v892 = vlaneseq
  %v893 = vshrl.u32 %v892, 7
  %v894 = vsub.s32 1, %v893
  %v895 = vrot.slane %v276, %v894
  %v896 = vadd.f32 %v879, %v895
  %v897 = vadd.f32 %v884, %v895
  %v898 = vadd.f32 %v889, %v895
  %v899 = vmul.f32 %v896, %v87
  %v900 = vmul.f32 %v897, %v88
  %v901 = vmul.f32 %v898, %v89
  %v902 = vsel %vm20, %v899, 0.0
  %v903 = vsel %vm20, %v900, 0.0
  %v904 = vadd.f32 %v902, %v903
  %v905 = vsel %vm20, %v901, 0.0
  %v906 = vadd.f32 %v904, %v905
  %v907 = vrot.slane %v906, 4
  %v908 = vadd.f32 %v906, %v907
  %v909 = vrot.slane %v908, 2
  %v910 = vadd.f32 %v908, %v909
  %v911 = vrot.slane %v910, 1
  %v912 = vadd.f32 %v910, %v911
  %v913 = vmul.f32 %v912, %v90
  %v914 = vsub.f32 %v899, %v913
  %v915 = vsub.f32 %v900, %v913
  %v916 = vsub.f32 %v901, %v913
  %v917 = vmul.f32 %v914, %v87
  %v918 = vmul.f32 %v915, %v88
  %v919 = vmul.f32 %v916, %v89
  %v920 = vmul.f32 %v917, %v917
  %v921 = vmul.f32 %v918, %v918
  %v922 = vmul.f32 %v919, %v919
  %v923 = vsel %vm20, %v920, 0.0
  %v924 = vsel %vm20, %v921, 0.0
  %v925 = vadd.f32 %v923, %v924
  %v926 = vsel %vm20, %v922, 0.0
  %v927 = vadd.f32 %v925, %v926
  %v928 = vrot.slane %v927, 4
  %v929 = vadd.f32 %v927, %v928
  %v930 = vrot.slane %v929, 2
  %v931 = vadd.f32 %v929, %v930
  %v932 = vrot.slane %v931, 1
  %v933 = vadd.f32 %v931, %v932
  %v934 = vmul.f32 %v933, %v90
  %v935 = vadd.f32 %v934, 1.0
  %v936 = vrsqrt.pop %v935
  %v937 = vmul.f32 %v917, %v936
  %v938 = vmul.f32 %v918, %v936
  %v939 = vmul.f32 %v919, %v936
  %v940 = vlaneseq
  %v941 = vshrl.u32 %v940, 7
  %v942 = vsub.s32 4, %v941
  %v943 = vrot.slane %v276, %v942
  %v944 = vmul.f32 %v943, %v937
  %v945 = vmul.f32 %v943, %v938
  %v946 = vmul.f32 %v943, %v939
  %v947 = vlaneseq
  %v948 = vshrl.u32 %v947, 7
  %v949 = vsub.s32 5, %v948
  %v950 = vrot.slane %v276, %v949
  %v951 = vadd.f32 %v944, %v950
  %v952 = vadd.f32 %v945, %v950
  %v953 = vadd.f32 %v946, %v950
  %vm954 = vcmp.gt.f32.partialorder %v951, 0.0
  %vm955 = vcmp.gt.f32.partialorder %v952, 0.0
  %vm956 = vcmp.gt.f32.partialorder %v953, 0.0
  %v957 = vlaneseq
  %v958 = vshrl.u32 %v957, 7
  %v959 = vsub.s32 7, %v958
  %v960 = vrot.slane %v276, %v959
  %v961 = vmul.f32 %v960, %v951
  %v962 = vmul.f32 %v960, %v952
  %v963 = vmul.f32 %v960, %v953
  %v964 = vsel %vm954, %v951, %v961
  %v965 = vsel %vm955, %v952, %v962
  %v966 = vsel %vm956, %v953, %v963
  %v967 = vmul.f32 %v964, %v87
  %v968 = vmul.f32 %v965, %v88
  %v969 = vmul.f32 %v966, %v89
  %v970 = vld [vmem:[%s4 + $0x80] sm:$0xff]
  %v971 = vld [vmem:[%s4 + $0x88] sm:$0xff]
  %v972 = vld [vmem:[%s4 + $0x90] sm:$0xff]
  %v973 = vld [vmem:[%s4 + $0x98] sm:$0xff]
  %v974 = vld [vmem:[%s4 + $0xa0] sm:$0xff]
  %v975 = vld [vmem:[%s4 + $0xa8] sm:$0xff]
  %v976 = vld [vmem:[%s4 + $0xb0] sm:$0xff]
  %v977 = vld [vmem:[%s4 + $0xb8] sm:$0xff]
  %v978 = vlaneseq
  %v979 = vshrl.u32 %v978, 7
  %v980 = vsub.s32 0, %v979
  %v981 = vrot.slane %v277, %v980
  %v982 = vmul.f32 %v69, %v981
  %v983 = vmul.f32 %v70, %v981
  %v984 = vmul.f32 %v71, %v981
  %v986 = vsel %vm20, %v967, 0
  %v989 = vsel %vm20, %v968, 0
  %v992 = vsel %vm20, %v969, 0
  %994 = vmatprep.subr.mxu0 0.0
  %995 = vmatpush1.msra.mxu0 0.0
  %996 = vmatprep.subr.mxu0 0.0
  %997 = vmatpush1.msra.mxu0 0.0
  %998 = vmatprep.subr.mxu0 0.0
  %999 = vmatpush1.msra.mxu0 0.0
  %1000 = vmatprep.subr.mxu0 0.0
  %1001 = vmatpush1.msra.mxu0 0.0
  %1002 = vmatprep.subr.mxu0 0.0
  %1003 = vmatpush1.msra.mxu0 0.0
  %1004 = vmatprep.subr.mxu0 0.0
  %1005 = vmatpush1.msra.mxu0 0.0
  %1006 = vmatprep.subr.mxu0 0.0
  %1007 = vmatpush1.msra.mxu0 0.0
  %1008 = vmatprep.subr.mxu0 0.0
  %1009 = vmatpush1.msra.mxu0 0.0
  %1010 = vmatprep.subr.mxu0 0.0
  %1011 = vmatpush1.msra.mxu0 %v977
  %1012 = vmatprep.subr.mxu0 0.0
  %1013 = vmatpush1.msra.mxu0 %v976
  %1014 = vmatprep.subr.mxu0 0.0
  %1015 = vmatpush1.msra.mxu0 %v975
  %1016 = vmatprep.subr.mxu0 0.0
  %1017 = vmatpush1.msra.mxu0 %v974
  %1018 = vmatprep.subr.mxu0 0.0
  %1019 = vmatpush1.msra.mxu0 %v973
  %1020 = vmatprep.subr.mxu0 0.0
  %1021 = vmatpush1.msra.mxu0 %v972
  %1022 = vmatprep.subr.mxu0 0.0
  %1023 = vmatpush1.msra.mxu0 %v971
  %1024 = vmatprep.subr.mxu0 0.0
  %1025 = vmatpush1.msra.mxu0 %v970
  %1026 = vmatprep.subr.mxu0 0.0
  %1027 = vmatpush2.msra.mxu0 0.0
  %1028 = vmatprep.subr.mxu0 0.0
  %1029 = vmatpush2.msra.mxu0 0.0
  %1030 = vmatprep.subr.mxu0 0.0
  %1031 = vmatpush2.msra.mxu0 0.0
  %1032 = vmatprep.subr.mxu0 0.0
  %1033 = vmatpush2.msra.mxu0 0.0
  %1034 = vmatprep.subr.mxu0 0.0
  %1035 = vmatpush2.msra.mxu0 0.0
  %1036 = vmatprep.subr.mxu0 0.0
  %1037 = vmatpush2.msra.mxu0 0.0
  %1038 = vmatprep.subr.mxu0 0.0
  %1039 = vmatpush2.msra.mxu0 0.0
  %1040 = vmatprep.subr.mxu0 0.0
  %1041 = vmatpush2.msra.mxu0 0.0
  %1042 = vmatprep.subr.mxu0 0.0
  %1043 = vmatpush2.msra.mxu0 0.0
  %1044 = vmatprep.subr.mxu0 0.0
  %1045 = vmatpush2.msra.mxu0 0.0
  %1046 = vmatprep.subr.mxu0 0.0
  %1047 = vmatpush2.msra.mxu0 0.0
  %1048 = vmatprep.subr.mxu0 0.0
  %1049 = vmatpush2.msra.mxu0 0.0
  %1050 = vmatprep.subr.mxu0 0.0
  %1051 = vmatpush2.msra.mxu0 0.0
  %1052 = vmatprep.subr.mxu0 0.0
  %1053 = vmatpush2.msra.mxu0 0.0
  %1054 = vmatprep.subr.mxu0 0.0
  %1055 = vmatpush2.msra.mxu0 0.0
  %1056 = vmatprep.subr.mxu0 0.0
  %1057 = vmatpush2.msra.mxu0 0.0
  %1058 = vmatprep.mubr.f32.mxu0 0.0
  %1059 = vmatmul.mubr.f32.gmra.mxu0 %v986
  %v1060 = vpop.f32.mrf.mxu0
  %v1061 = vadd.f32 %v982, %v1060
  %v1062 = vpop.f32.mrf.mxu0
  %1063 = vmatprep.mubr.f32.mxu0 0.0
  %1064 = vmatmul.mubr.f32.gmra.mxu0 %v989
  %v1065 = vpop.f32.mrf.mxu0
  %v1066 = vadd.f32 %v983, %v1065
  %v1067 = vpop.f32.mrf.mxu0
  %1068 = vmatprep.mubr.f32.mxu0 0.0
  %1069 = vmatmul.mubr.f32.gmra.mxu0 %v992
  %v1070 = vpop.f32.mrf.mxu0
  %v1071 = vadd.f32 %v984, %v1070
  %v1072 = vpop.f32.mrf.mxu0
  %1073 = vdwg.mxu0
  %v1074 = vlaneseq
  %v1075 = vshrl.u32 %v1074, 7
  %v1076 = vsub.s32 1, %v1075
  %v1077 = vrot.slane %v277, %v1076
  %v1078 = vmul.f32 %v81, %v1077
  %v1079 = vmul.f32 %v82, %v1077
  %v1080 = vmul.f32 %v83, %v1077
  %v1081 = vadd.f32 %v1061, %v1078
  %v1082 = vadd.f32 %v1066, %v1079
  %v1083 = vadd.f32 %v1071, %v1080
  %v1085 = vsel %vm20, %v1081, 0
  %v1088 = vsel %vm20, %v1082, 0
  %v1091 = vsel %vm20, %v1083, 0
  %1093 = vmatprep.subr.mxu0 0.0
  %1094 = vmatpush1.xpose.msra.mxu0 0.0
  %1095 = vmatprep.subr.mxu0 0.0
  %1096 = vmatpush1.xpose.msra.mxu0 0.0
  %1097 = vmatprep.subr.mxu0 0.0
  %1098 = vmatpush1.xpose.msra.mxu0 0.0
  %1099 = vmatprep.subr.mxu0 0.0
  %1100 = vmatpush1.xpose.msra.mxu0 0.0
  %1101 = vmatprep.subr.mxu0 0.0
  %1102 = vmatpush1.xpose.msra.mxu0 0.0
  %1103 = vmatprep.subr.mxu0 0.0
  %1104 = vmatpush1.xpose.msra.mxu0 0.0
  %1105 = vmatprep.subr.mxu0 0.0
  %1106 = vmatpush1.xpose.msra.mxu0 0.0
  %1107 = vmatprep.subr.mxu0 0.0
  %1108 = vmatpush1.xpose.msra.mxu0 0.0
  %1109 = vmatprep.subr.mxu0 0.0
  %1110 = vmatpush1.xpose.msra.mxu0 0.0
  %1111 = vmatprep.subr.mxu0 0.0
  %1112 = vmatpush1.xpose.msra.mxu0 0.0
  %1113 = vmatprep.subr.mxu0 0.0
  %1114 = vmatpush1.xpose.msra.mxu0 0.0
  %1115 = vmatprep.subr.mxu0 0.0
  %1116 = vmatpush1.xpose.msra.mxu0 0.0
  %1117 = vmatprep.subr.mxu0 0.0
  %1118 = vmatpush1.xpose.msra.mxu0 0.0
  %1119 = vmatprep.subr.mxu0 0.0
  %1120 = vmatpush1.xpose.msra.mxu0 %v1091
  %1121 = vmatprep.subr.mxu0 0.0
  %1122 = vmatpush1.xpose.msra.mxu0 %v1088
  %1123 = vmatprep.subr.mxu0 0.0
  %1124 = vmatpush1.xpose.msra.mxu0 %v1085
  %1125 = vmatprep.subr.mxu0 0.0
  %1126 = vmatpush2.xpose.msra.mxu0 0.0
  %1127 = vmatprep.subr.mxu0 0.0
  %1128 = vmatpush2.xpose.msra.mxu0 0.0
  %1129 = vmatprep.subr.mxu0 0.0
  %1130 = vmatpush2.xpose.msra.mxu0 0.0
  %1131 = vmatprep.subr.mxu0 0.0
  %1132 = vmatpush2.xpose.msra.mxu0 0.0
  %1133 = vmatprep.subr.mxu0 0.0
  %1134 = vmatpush2.xpose.msra.mxu0 0.0
  %1135 = vmatprep.subr.mxu0 0.0
  %1136 = vmatpush2.xpose.msra.mxu0 0.0
  %1137 = vmatprep.subr.mxu0 0.0
  %1138 = vmatpush2.xpose.msra.mxu0 0.0
  %1139 = vmatprep.subr.mxu0 0.0
  %1140 = vmatpush2.xpose.msra.mxu0 0.0
  %1141 = vmatprep.subr.mxu0 0.0
  %1142 = vmatpush2.xpose.msra.mxu0 0.0
  %1143 = vmatprep.subr.mxu0 0.0
  %1144 = vmatpush2.xpose.msra.mxu0 0.0
  %1145 = vmatprep.subr.mxu0 0.0
  %1146 = vmatpush2.xpose.msra.mxu0 0.0
  %1147 = vmatprep.subr.mxu0 0.0
  %1148 = vmatpush2.xpose.msra.mxu0 0.0
  %1149 = vmatprep.subr.mxu0 0.0
  %1150 = vmatpush2.xpose.msra.mxu0 0.0
  %1151 = vmatprep.subr.mxu0 0.0
  %1152 = vmatpush2.xpose.msra.mxu0 0.0
  %1153 = vmatprep.subr.mxu0 0.0
  %1154 = vmatpush2.xpose.msra.mxu0 0.0
  %1155 = vmatprep.subr.mxu0 0.0
  %1156 = vmatpush2.xpose.msra.mxu0 0.0
  %1157 = vmatprep.mubr.f32.mxu0 0.0
  %1158 = vmatmul.mubr.f32.gmra.mxu0 %v1085
  %v1159 = vpop.f32.mrf.mxu0
  %v1160 = vadd.f32 0.0, %v1159
  %v1161 = vpop.f32.mrf.mxu0
  %1162 = vmatprep.mubr.f32.mxu0 0.0
  %1163 = vmatmul.mubr.f32.gmra.mxu0 %v1088
  %v1164 = vpop.f32.mrf.mxu0
  %v1165 = vadd.f32 0.0, %v1164
  %v1166 = vpop.f32.mrf.mxu0
  %1167 = vmatprep.mubr.f32.mxu0 0.0
  %1168 = vmatmul.mubr.f32.gmra.mxu0 %v1091
  %v1169 = vpop.f32.mrf.mxu0
  %v1170 = vadd.f32 0.0, %v1169
  %v1171 = vpop.f32.mrf.mxu0
  %1172 = vdwg.mxu0
  %v1174 = vsel %vm466, %v1160, 0
  %v1177 = vsel %vm466, %v1165, 0
  %v1180 = vsel %vm466, %v1170, 0
  %1182 = vmatprep.subr.mxu0 0.0
  %1183 = vmatpush1.msra.mxu0 0.0
  %1184 = vmatprep.subr.mxu0 0.0
  %1185 = vmatpush1.msra.mxu0 0.0
  %1186 = vmatprep.subr.mxu0 0.0
  %1187 = vmatpush1.msra.mxu0 0.0
  %1188 = vmatprep.subr.mxu0 0.0
  %1189 = vmatpush1.msra.mxu0 0.0
  %1190 = vmatprep.subr.mxu0 0.0
  %1191 = vmatpush1.msra.mxu0 0.0
  %1192 = vmatprep.subr.mxu0 0.0
  %1193 = vmatpush1.msra.mxu0 0.0
  %1194 = vmatprep.subr.mxu0 0.0
  %1195 = vmatpush1.msra.mxu0 0.0
  %1196 = vmatprep.subr.mxu0 0.0
  %1197 = vmatpush1.msra.mxu0 0.0
  %1198 = vmatprep.subr.mxu0 0.0
  %1199 = vmatpush1.msra.mxu0 0.0
  %1200 = vmatprep.subr.mxu0 0.0
  %1201 = vmatpush1.msra.mxu0 0.0
  %1202 = vmatprep.subr.mxu0 0.0
  %1203 = vmatpush1.msra.mxu0 0.0
  %1204 = vmatprep.subr.mxu0 0.0
  %1205 = vmatpush1.msra.mxu0 0.0
  %1206 = vmatprep.subr.mxu0 0.0
  %1207 = vmatpush1.msra.mxu0 0.0
  %1208 = vmatprep.subr.mxu0 0.0
  %1209 = vmatpush1.msra.mxu0 %v65
  %1210 = vmatprep.subr.mxu0 0.0
  %1211 = vmatpush1.msra.mxu0 %v64
  %1212 = vmatprep.subr.mxu0 0.0
  %1213 = vmatpush1.msra.mxu0 %v63
  %1214 = vmatprep.subr.mxu0 0.0
  %1215 = vmatpush2.msra.mxu0 0.0
  %1216 = vmatprep.subr.mxu0 0.0
  %1217 = vmatpush2.msra.mxu0 0.0
  %1218 = vmatprep.subr.mxu0 0.0
  %1219 = vmatpush2.msra.mxu0 0.0
  %1220 = vmatprep.subr.mxu0 0.0
  %1221 = vmatpush2.msra.mxu0 0.0
  %1222 = vmatprep.subr.mxu0 0.0
  %1223 = vmatpush2.msra.mxu0 0.0
  %1224 = vmatprep.subr.mxu0 0.0
  %1225 = vmatpush2.msra.mxu0 0.0
  %1226 = vmatprep.subr.mxu0 0.0
  %1227 = vmatpush2.msra.mxu0 0.0
  %1228 = vmatprep.subr.mxu0 0.0
  %1229 = vmatpush2.msra.mxu0 0.0
  %1230 = vmatprep.subr.mxu0 0.0
  %1231 = vmatpush2.msra.mxu0 0.0
  %1232 = vmatprep.subr.mxu0 0.0
  %1233 = vmatpush2.msra.mxu0 0.0
  %1234 = vmatprep.subr.mxu0 0.0
  %1235 = vmatpush2.msra.mxu0 0.0
  %1236 = vmatprep.subr.mxu0 0.0
  %1237 = vmatpush2.msra.mxu0 0.0
  %1238 = vmatprep.subr.mxu0 0.0
  %1239 = vmatpush2.msra.mxu0 0.0
  %1240 = vmatprep.subr.mxu0 0.0
  %1241 = vmatpush2.msra.mxu0 0.0
  %1242 = vmatprep.subr.mxu0 0.0
  %1243 = vmatpush2.msra.mxu0 0.0
  %1244 = vmatprep.subr.mxu0 0.0
  %1245 = vmatpush2.msra.mxu0 0.0
  %1246 = vmatprep.mubr.f32.mxu0 0.0
  %1247 = vmatmul.mubr.f32.gmra.mxu0 %v1174
  %v1248 = vpop.f32.mrf.mxu0
  %v1249 = vadd.f32 0.0, %v1248
  %v1250 = vpop.f32.mrf.mxu0
  %1251 = vmatprep.mubr.f32.mxu0 0.0
  %1252 = vmatmul.mubr.f32.gmra.mxu0 %v1177
  %v1253 = vpop.f32.mrf.mxu0
  %v1254 = vadd.f32 0.0, %v1253
  %v1255 = vpop.f32.mrf.mxu0
  %1256 = vmatprep.mubr.f32.mxu0 0.0
  %1257 = vmatmul.mubr.f32.gmra.mxu0 %v1180
  %v1258 = vpop.f32.mrf.mxu0
  %v1259 = vadd.f32 0.0, %v1258
  %v1260 = vpop.f32.mrf.mxu0
  %1261 = vdwg.mxu0
  %v1262 = vmul.f32 %v53, %v1249
  %v1263 = vmul.f32 %v54, %v1254
  %v1264 = vmul.f32 %v55, %v1259
  %v1265 = vadd.f32 %v1262, %v1263
  %v1266 = vadd.f32 %v1265, %v1264
  %v1267 = vrot.slane %v1266, 4
  %v1268 = vadd.f32 %v1266, %v1267
  %v1269 = vrot.slane %v1268, 2
  %v1270 = vadd.f32 %v1268, %v1269
  %v1271 = vrot.slane %v1270, 1
  %v1272 = vadd.f32 %v1270, %v1271
  %v1273 = vxor.u32 %v1272, 2147483648
  %v1274 = vmul.f32 %v1273, 1.442695
  %v1275 = vpow.pop %v1274
  %v1276 = vadd.f32 %v1275, 1.0
  %v1277 = vrcp.pop %v1276
  %v1278 = vmul.f32 1.0, %v1277
  %1279 = vst [vmem:[%s5] sm:$0xff] %v1278
  // Predicated region
  $region22: #{hetero_gnn_forward.1} parent=0 // pred_check
    _
  $region23: #{hetero_gnn_forward.1} parent=0 // pred_check_branch
    %1281 = sbr.rel (0) target = $region25
  $region24: #{hetero_gnn_forward.1} parent=0 // pred_region
    _
  $region25: #{hetero_gnn_forward.1} parent=0 // pred_fallthru
    _
  // Predicated region
  $region26: #{hetero_gnn_forward.1} parent=0 // pred_check
    _
  $region27: #{hetero_gnn_forward.1} parent=0 // pred_check_branch
    %1283 = sbr.rel (0) target = $region29
  $region28: #{hetero_gnn_forward.1} parent=0 // pred_region
    _
  $region29: #{hetero_gnn_forward.1} parent=0 // pred_fallthru
    _

</llo_original>
